<compile_context>
chip_gen: v5e
topology: v5e:2x2
jax: 0.10.0
libtpu: 0.0.40
codegen_flags: <defaults>
</compile_context>

<pallas_src>
import functools
import math

import jax
import jax.numpy as jnp
from jax.experimental import pallas as pl
from jax.experimental.pallas import tpu as pltpu

KH = KW = 3          # conv kernel of the stand-in cnn_2d backbone
OUT_PAD = 128        # lane-padded output width (unmasked (8,128) vst)
N_PRED_PAD = 8       # sublane-padded number of prediction rows


def _read_shifted(xb, off):
    """y[:, i] = xb[:, (i + off) mod N]  (static lane rotation).

    Out-of-image lanes are zeroed by the boundary masks in the caller.  This
    lowers to the same XLU lane-rotate path as pltpu.roll(shift=-off) but with
    unambiguous direction semantics.
    """
    n = xb.shape[-1]
    k = off % n
    if k == 0:
        return xb
    return jnp.concatenate([xb[:, k:], xb[:, :k]], axis=1)


# ---------------------------------------------------------------------------
# Fused kernel: one grid step == B_TILE batch elements.
#   conv3x3 (SAME) + bias + ReLU + global-average-pool + FC head.
#   RHS layout: sublane = image*Cin + channel (rows), lane = local_batch*HW + pixel.
# ---------------------------------------------------------------------------
def fused_forward_kernel(x_ref, wconv_ref, bconv_ref, wfct_ref, bfc_ref,
                         sel_ref, o_ref, *, img_w, img_h):
    # x_ref    : (rows, N)          rows = 2*Cin, N = B_TILE*H*W   (f32)
    # wconv_ref: (2*Cout, 9*rows)   block-diagonal im2col conv weights (bf16)
    # bconv_ref: (2*Cout, 1)        conv bias tiled over the two images (f32)
    # wfct_ref : (8, 2*Cout)        FC weights^T, row padded, GAP scale folded
    # bfc_ref  : (8, 1)             FC bias, row padded
    # sel_ref  : (N, OUT_PAD)       per-batch-segment ones selector (GAP on MXU)
    # o_ref    : (8, OUT_PAD)       logits slab: [pred_row, local_batch_col]
    rows, n_lanes = x_ref.shape
    hw = img_w * img_h

    xb = x_ref[...]                                         # (rows, N) f32

    # Boundary masks (cheap AND/shift when sizes are powers of two).
    lane = jax.lax.broadcasted_iota(jnp.int32, (1, n_lanes), 1)
    if (hw & (hw - 1)) == 0 and (img_w & (img_w - 1)) == 0:
        pix = lane & (hw - 1)                               # pixel within image
        col = pix & (img_w - 1)
        row = pix >> int(math.log2(img_w))
    else:
        pix = lane % hw
        col = pix % img_w
        row = pix // img_w
    left_ok = col >= 1                  # tap reads column x-1
    right_ok = col <= img_w - 2         # tap reads column x+1
    top_ok = row >= 1                   # tap reads row y-1
    bot_ok = row <= img_h - 2           # tap reads row y+1

    # 9 shifted/masked copies stacked along the contraction (sublane) axis.
    # Lane rotations land on the XLU; masks also zero the lanes that a rotation
    # pulled across image/batch-segment boundaries (incl. the wrap-around).
    pieces = []
    for dy in range(KH):
        for dx in range(KW):
            off = (dy - 1) * img_w + (dx - 1)
            xs = _read_shifted(xb, off)
            need = []
            if dy == 0:
                need.append(top_ok)
            if dy == KH - 1:
                need.append(bot_ok)
            if dx == 0:
                need.append(left_ok)
            if dx == KW - 1:
                need.append(right_ok)
            if need:
                m = need[0]
                for mm in need[1:]:
                    m = jnp.logical_and(m, mm)
                xs = jnp.where(m, xs, 0.0)                  # f32 masking (v5e-safe)
            pieces.append(xs)
    xs_all = jnp.concatenate(pieces, axis=0).astype(jnp.bfloat16)   # (9*rows, N)

    # Whole 3x3 conv for B_TILE batch elements = ONE bf16 MXU matmul (f32 acc).
    acc = jnp.dot(wconv_ref[...], xs_all,
                  preferred_element_type=jnp.float32)       # (2*Cout, N)
    acc = jnp.maximum(acc + bconv_ref[...], 0.0)            # bias + ReLU

    # GAP + FC entirely on the MXU:
    #   tmp[j, n]    = sum_c wfc_t[j, c] * acc[c, n]         (1/(H*W) folded in)
    #   logits[j, b] = sum_n tmp[j, n] * sel[n, b]           (per-segment sum)
    tmp = jnp.dot(wfct_ref[...], acc,
                  preferred_element_type=jnp.float32)       # (8, N)
    logits = jnp.dot(tmp, sel_ref[...],
                     preferred_element_type=jnp.float32)    # (8, OUT_PAD)
    o_ref[...] = (logits + bfc_ref[...]).astype(o_ref.dtype)


# ---------------------------------------------------------------------------
# One-time parameter prep (outside the jitted forward).
# ---------------------------------------------------------------------------
def pack_params(params, *, img_hw, b_tile, out_pad=OUT_PAD, n_pred_pad=N_PRED_PAD):
    conv_w = params["conv_w"]                        # (3, 3, Cin, Cout)
    conv_b = params["conv_b"].reshape(-1)            # (Cout,)
    fc_w = params["fc_w"]                            # (2*Cout, n_predict)
    fc_b = params["fc_b"].reshape(-1)                # (n_predict,)
    kh, kw, cin, cout = conv_w.shape
    n_pred = fc_w.shape[-1]
    assert n_pred <= n_pred_pad and b_tile <= out_pad

    # Block-diagonal (over the two 2.5D images of a batch element) im2col
    # weights: row = img*Cout + o ; column = tap*(2*Cin) + img*Cin + c.
    eye2 = jnp.eye(2, dtype=conv_w.dtype)
    taps = [jnp.kron(eye2, conv_w[dy, dx].T)         # (2*Cout, 2*Cin) each
            for dy in range(kh) for dx in range(kw)]
    w_conv = jnp.concatenate(taps, axis=1).astype(jnp.bfloat16)   # (2*Cout, 9*2*Cin)

    b_conv = jnp.tile(conv_b, 2).reshape(-1, 1)      # (2*Cout, 1)

    # FC head: transposed, row-padded to 8 predictions, GAP scale folded in.
    w_fc_t = jnp.zeros((n_pred_pad, 2 * cout), jnp.float32)
    w_fc_t = w_fc_t.at[:n_pred, :].set((fc_w / float(img_hw)).T)
    b_fc = jnp.zeros((n_pred_pad, 1), jnp.float32).at[:n_pred, 0].set(fc_b)

    # GAP selector: sel[b*HW + p, b] = 1 -> per-segment sum as an MXU matmul.
    seg = jnp.arange(b_tile * img_hw)[:, None] // img_hw
    lane = jnp.arange(out_pad)[None, :]
    sel = (seg == lane).astype(jnp.float32)          # (b_tile*HW, OUT_PAD)

    return {"w_conv": w_conv, "b_conv": b_conv, "w_fc_t": w_fc_t,
            "b_fc": b_fc, "sel": sel}


# ---------------------------------------------------------------------------
# Forward wrapper: layout plumbing + one fused pallas_call.
# ---------------------------------------------------------------------------
def model_2p5d_forward(x, mask, packed, *, n_predict, b_tile):
    del mask                                         # unused in the reference forward
    bs, _, seq_len, w, h = x.shape
    hw = w * h
    rows = seq_len                                   # = 2*Cin (both images stacked)
    assert rows % 8 == 0 and hw % 128 == 0           # (8,128) block-tiling rule
    assert bs % b_tile == 0
    num_steps = bs // b_tile
    n_lanes = b_tile * hw

    # (bs,1,seq,W,H) -> (steps, b_tile, rows, HW) -> (steps, rows, b_tile, HW)
    # -> (steps*rows, b_tile*HW): lane index = local_batch*HW + pixel.
    x2 = x.reshape(num_steps, b_tile, rows, hw)
    x2 = jnp.transpose(x2, (0, 2, 1, 3)).reshape(num_steps * rows, n_lanes)

    out = pl.pallas_call(
        functools.partial(fused_forward_kernel, img_w=h, img_h=w),
        out_shape=jax.ShapeDtypeStruct((num_steps, N_PRED_PAD, OUT_PAD),
                                       jnp.float32),
        grid=(num_steps,),
        in_specs=[
            pl.BlockSpec((rows, n_lanes), lambda s: (s, 0)),
            pl.BlockSpec(packed["w_conv"].shape, lambda s: (0, 0)),
            pl.BlockSpec(packed["b_conv"].shape, lambda s: (0, 0)),
            pl.BlockSpec(packed["w_fc_t"].shape, lambda s: (0, 0)),
            pl.BlockSpec(packed["b_fc"].shape, lambda s: (0, 0)),
            pl.BlockSpec(packed["sel"].shape, lambda s: (0, 0)),
        ],
        out_specs=pl.BlockSpec((None, N_PRED_PAD, OUT_PAD), lambda s: (s, 0, 0)),
        compiler_params=pltpu.CompilerParams(
            dimension_semantics=("parallel",),
            vmem_limit_bytes=32 * 1024 * 1024),
    )(x2, packed["w_conv"], packed["b_conv"], packed["w_fc_t"],
      packed["b_fc"], packed["sel"])

    # out[s, j, b] = logit j of batch element s*b_tile + b.
    logits = out[:, :n_predict, :b_tile]             # (steps, n_pred, b_tile)
    logits = jnp.transpose(logits, (0, 2, 1)).reshape(bs, n_predict)
    return logits, None, None


# Pure-JAX reference (for correctness check only; conv operands rounded to
# bf16 to mirror the kernel's bf16 MXU conv with f32 accumulation).
def reference_forward(x, params):
    bs, _, seq_len, w, h = x.shape
    xr = x.reshape(bs * 2, seq_len // 2, w, h)
    xn = jnp.transpose(xr, (0, 2, 3, 1))
    xn = xn.astype(jnp.bfloat16).astype(jnp.float32)
    cw = params["conv_w"].astype(jnp.bfloat16).astype(jnp.float32)
    y = jax.lax.conv_general_dilated(
        xn, cw, window_strides=(1, 1), padding="SAME",
        dimension_numbers=("NHWC", "HWIO", "NHWC"),
        precision=jax.lax.Precision.HIGHEST)
    y = jnp.maximum(y + params["conv_b"].reshape(1, 1, 1, -1), 0.0)
    feat = jnp.mean(y, axis=(1, 2)).reshape(bs, -1)
    return jnp.dot(feat, params["fc_w"],
                   precision=jax.lax.Precision.HIGHEST) + params["fc_b"]


if __name__ == "__main__":
    # Small synthetic shapes consistent with the forward pass.
    bs, seq_len, W, H = 8, 8, 16, 16          # x: (bs, 1, seq_len, W, H)
    cin = seq_len // 2                        # channels seen by cnn_2d
    cout = 32                                 # backbone feature width
    n_predict_frames = 1                      # Config.n_predict_frames
    B_TILE = 4                                # 2 grid steps -> both v7x TCs busy

    key = jax.random.PRNGKey(0)
    kx, kcw, kcb, kfw, kfb = jax.random.split(key, 5)

    x = jax.random.normal(kx, (bs, 1, seq_len, W, H), dtype=jnp.float32)
    mask = jnp.ones((bs, seq_len), dtype=jnp.float32)   # unused, as in PyTorch

    params = {
        "conv_w": 0.1 * jax.random.normal(kcw, (KH, KW, cin, cout), jnp.float32),
        "conv_b": 0.01 * jax.random.normal(kcb, (1, cout), jnp.float32),
        "fc_w": 0.1 * jax.random.normal(kfw, (2 * cout, n_predict_frames),
                                        jnp.float32),
        "fc_b": 0.01 * jax.random.normal(kfb, (1, n_predict_frames), jnp.float32),
    }

    packed = pack_params(params, img_hw=W * H, b_tile=B_TILE)
    forward = jax.jit(functools.partial(model_2p5d_forward,
                                        n_predict=n_predict_frames,
                                        b_tile=B_TILE))

    out, aux1, aux2 = forward(x, mask, packed)
    out = jax.block_until_ready(out)
    assert out.shape == (bs, n_predict_frames)
    assert aux1 is None and aux2 is None

    ref = jax.block_until_ready(reference_forward(x, params))
    assert jnp.allclose(out, ref, rtol=2e-2, atol=2e-2), (out, ref)

    print("KERNEL_OK")
</pallas_src>

<mosaic_0001>
module attributes {stable_mosaic.version = 11 : i64} {
  func.func @fused_forward_kernel(%arg0: i32, %arg1: memref<8x1024xf32, #tpu.memory_space<vmem>>, %arg2: memref<64x72xbf16, #tpu.memory_space<vmem>>, %arg3: memref<64x1xf32, #tpu.memory_space<vmem>>, %arg4: memref<8x64xf32, #tpu.memory_space<vmem>>, %arg5: memref<8x1xf32, #tpu.memory_space<vmem>>, %arg6: memref<1024x128xf32, #tpu.memory_space<vmem>>, %arg7: memref<1x8x128xf32, #tpu.memory_space<vmem>>) attributes {dimension_semantics = [#tpu.dimension_semantics<parallel>], iteration_bounds = array<i64: 2>, scalar_prefetch = 0 : i64, scratch_operands = 0 : i64, tpu.core_type = #tpu.core_type<tc>, window_params = [{transform_indices = @transform_0, window_bounds = array<i64: 8, 1024>}, {pipeline_mode = #tpu.pipeline_mode<synchronous>, transform_indices = @transform_1, window_bounds = array<i64: 64, 72>}, {pipeline_mode = #tpu.pipeline_mode<synchronous>, transform_indices = @transform_2, window_bounds = array<i64: 64, 1>}, {pipeline_mode = #tpu.pipeline_mode<synchronous>, transform_indices = @transform_3, window_bounds = array<i64: 8, 64>}, {pipeline_mode = #tpu.pipeline_mode<synchronous>, transform_indices = @transform_4, window_bounds = array<i64: 8, 1>}, {pipeline_mode = #tpu.pipeline_mode<synchronous>, transform_indices = @transform_5, window_bounds = array<i64: 1024, 128>}, {transform_indices = @transform_6, window_bounds = array<i64: 1, 8, 128>}]} {
    %c0 = arith.constant 0 : index
    %c0_0 = arith.constant 0 : index
    %0 = vector.load %arg1[%c0, %c0_0] : memref<8x1024xf32, #tpu.memory_space<vmem>>, vector<8x1024xf32>
    %1 = tpu.iota {dimensions = array<i32: 1>} : vector<1x1024xi32>
    %c255_i32 = arith.constant 255 : i32
    %2 = vector.broadcast %c255_i32 : i32 to vector<1x1024xi32>
    %3 = arith.andi %1, %2 : vector<1x1024xi32>
    %c15_i32 = arith.constant 15 : i32
    %4 = vector.broadcast %c15_i32 : i32 to vector<1x1024xi32>
    %5 = arith.andi %3, %4 : vector<1x1024xi32>
    %c4_i32 = arith.constant 4 : i32
    %6 = vector.broadcast %c4_i32 : i32 to vector<1x1024xi32>
    %7 = arith.shrsi %3, %6 : vector<1x1024xi32>
    %c1_i32 = arith.constant 1 : i32
    %8 = vector.broadcast %c1_i32 : i32 to vector<1x1024xi32>
    %9 = arith.cmpi sge, %5, %8 : vector<1x1024xi32>
    %c14_i32 = arith.constant 14 : i32
    %10 = vector.broadcast %c14_i32 : i32 to vector<1x1024xi32>
    %11 = arith.cmpi sle, %5, %10 : vector<1x1024xi32>
    %c1_i32_1 = arith.constant 1 : i32
    %12 = vector.broadcast %c1_i32_1 : i32 to vector<1x1024xi32>
    %13 = arith.cmpi sge, %7, %12 : vector<1x1024xi32>
    %c14_i32_2 = arith.constant 14 : i32
    %14 = vector.broadcast %c14_i32_2 : i32 to vector<1x1024xi32>
    %15 = arith.cmpi sle, %7, %14 : vector<1x1024xi32>
    %16 = vector.extract_strided_slice %0 {offsets = [0, 1007], sizes = [8, 17], strides = [1, 1]} : vector<8x1024xf32> to vector<8x17xf32>
    %17 = vector.extract_strided_slice %0 {offsets = [0, 0], sizes = [8, 1007], strides = [1, 1]} : vector<8x1024xf32> to vector<8x1007xf32>
    %18 = tpu.concatenate %16, %17 in 1 : vector<8x17xf32>, vector<8x1007xf32> -> vector<8x1024xf32>
    %19 = arith.andi %13, %9 : vector<1x1024xi1>
    %cst = arith.constant 0.000000e+00 : f32
    %20 = vector.shape_cast %19 : vector<1x1024xi1> to vector<1x1024xi1>
    %21 = vector.broadcast %20 : vector<1x1024xi1> to vector<8x1024xi1>
    %22 = vector.broadcast %cst : f32 to vector<8x1024xf32>
    %23 = arith.select %21, %18, %22 : vector<8x1024xi1>, vector<8x1024xf32>
    %24 = vector.extract_strided_slice %0 {offsets = [0, 1008], sizes = [8, 16], strides = [1, 1]} : vector<8x1024xf32> to vector<8x16xf32>
    %25 = vector.extract_strided_slice %0 {offsets = [0, 0], sizes = [8, 1008], strides = [1, 1]} : vector<8x1024xf32> to vector<8x1008xf32>
    %26 = tpu.concatenate %24, %25 in 1 : vector<8x16xf32>, vector<8x1008xf32> -> vector<8x1024xf32>
    %cst_3 = arith.constant 0.000000e+00 : f32
    %27 = vector.shape_cast %13 : vector<1x1024xi1> to vector<1x1024xi1>
    %28 = vector.broadcast %27 : vector<1x1024xi1> to vector<8x1024xi1>
    %29 = vector.broadcast %cst_3 : f32 to vector<8x1024xf32>
    %30 = arith.select %28, %26, %29 : vector<8x1024xi1>, vector<8x1024xf32>
    %31 = vector.extract_strided_slice %0 {offsets = [0, 1009], sizes = [8, 15], strides = [1, 1]} : vector<8x1024xf32> to vector<8x15xf32>
    %32 = vector.extract_strided_slice %0 {offsets = [0, 0], sizes = [8, 1009], strides = [1, 1]} : vector<8x1024xf32> to vector<8x1009xf32>
    %33 = tpu.concatenate %31, %32 in 1 : vector<8x15xf32>, vector<8x1009xf32> -> vector<8x1024xf32>
    %34 = arith.andi %13, %11 : vector<1x1024xi1>
    %cst_4 = arith.constant 0.000000e+00 : f32
    %35 = vector.shape_cast %34 : vector<1x1024xi1> to vector<1x1024xi1>
    %36 = vector.broadcast %35 : vector<1x1024xi1> to vector<8x1024xi1>
    %37 = vector.broadcast %cst_4 : f32 to vector<8x1024xf32>
    %38 = arith.select %36, %33, %37 : vector<8x1024xi1>, vector<8x1024xf32>
    %39 = vector.extract_strided_slice %0 {offsets = [0, 1023], sizes = [8, 1], strides = [1, 1]} : vector<8x1024xf32> to vector<8x1xf32>
    %40 = vector.extract_strided_slice %0 {offsets = [0, 0], sizes = [8, 1023], strides = [1, 1]} : vector<8x1024xf32> to vector<8x1023xf32>
    %41 = tpu.concatenate %39, %40 in 1 : vector<8x1xf32>, vector<8x1023xf32> -> vector<8x1024xf32>
    %cst_5 = arith.constant 0.000000e+00 : f32
    %42 = vector.shape_cast %9 : vector<1x1024xi1> to vector<1x1024xi1>
    %43 = vector.broadcast %42 : vector<1x1024xi1> to vector<8x1024xi1>
    %44 = vector.broadcast %cst_5 : f32 to vector<8x1024xf32>
    %45 = arith.select %43, %41, %44 : vector<8x1024xi1>, vector<8x1024xf32>
    %46 = vector.extract_strided_slice %0 {offsets = [0, 1], sizes = [8, 1023], strides = [1, 1]} : vector<8x1024xf32> to vector<8x1023xf32>
    %47 = vector.extract_strided_slice %0 {offsets = [0, 0], sizes = [8, 1], strides = [1, 1]} : vector<8x1024xf32> to vector<8x1xf32>
    %48 = tpu.concatenate %46, %47 in 1 : vector<8x1023xf32>, vector<8x1xf32> -> vector<8x1024xf32>
    %cst_6 = arith.constant 0.000000e+00 : f32
    %49 = vector.shape_cast %11 : vector<1x1024xi1> to vector<1x1024xi1>
    %50 = vector.broadcast %49 : vector<1x1024xi1> to vector<8x1024xi1>
    %51 = vector.broadcast %cst_6 : f32 to vector<8x1024xf32>
    %52 = arith.select %50, %48, %51 : vector<8x1024xi1>, vector<8x1024xf32>
    %53 = vector.extract_strided_slice %0 {offsets = [0, 15], sizes = [8, 1009], strides = [1, 1]} : vector<8x1024xf32> to vector<8x1009xf32>
    %54 = vector.extract_strided_slice %0 {offsets = [0, 0], sizes = [8, 15], strides = [1, 1]} : vector<8x1024xf32> to vector<8x15xf32>
    %55 = tpu.concatenate %53, %54 in 1 : vector<8x1009xf32>, vector<8x15xf32> -> vector<8x1024xf32>
    %56 = arith.andi %15, %9 : vector<1x1024xi1>
    %cst_7 = arith.constant 0.000000e+00 : f32
    %57 = vector.shape_cast %56 : vector<1x1024xi1> to vector<1x1024xi1>
    %58 = vector.broadcast %57 : vector<1x1024xi1> to vector<8x1024xi1>
    %59 = vector.broadcast %cst_7 : f32 to vector<8x1024xf32>
    %60 = arith.select %58, %55, %59 : vector<8x1024xi1>, vector<8x1024xf32>
    %61 = vector.extract_strided_slice %0 {offsets = [0, 16], sizes = [8, 1008], strides = [1, 1]} : vector<8x1024xf32> to vector<8x1008xf32>
    %62 = vector.extract_strided_slice %0 {offsets = [0, 0], sizes = [8, 16], strides = [1, 1]} : vector<8x1024xf32> to vector<8x16xf32>
    %63 = tpu.concatenate %61, %62 in 1 : vector<8x1008xf32>, vector<8x16xf32> -> vector<8x1024xf32>
    %cst_8 = arith.constant 0.000000e+00 : f32
    %64 = vector.shape_cast %15 : vector<1x1024xi1> to vector<1x1024xi1>
    %65 = vector.broadcast %64 : vector<1x1024xi1> to vector<8x1024xi1>
    %66 = vector.broadcast %cst_8 : f32 to vector<8x1024xf32>
    %67 = arith.select %65, %63, %66 : vector<8x1024xi1>, vector<8x1024xf32>
    %68 = vector.extract_strided_slice %0 {offsets = [0, 17], sizes = [8, 1007], strides = [1, 1]} : vector<8x1024xf32> to vector<8x1007xf32>
    %69 = vector.extract_strided_slice %0 {offsets = [0, 0], sizes = [8, 17], strides = [1, 1]} : vector<8x1024xf32> to vector<8x17xf32>
    %70 = tpu.concatenate %68, %69 in 1 : vector<8x1007xf32>, vector<8x17xf32> -> vector<8x1024xf32>
    %71 = arith.andi %15, %11 : vector<1x1024xi1>
    %cst_9 = arith.constant 0.000000e+00 : f32
    %72 = vector.shape_cast %71 : vector<1x1024xi1> to vector<1x1024xi1>
    %73 = vector.broadcast %72 : vector<1x1024xi1> to vector<8x1024xi1>
    %74 = vector.broadcast %cst_9 : f32 to vector<8x1024xf32>
    %75 = arith.select %73, %70, %74 : vector<8x1024xi1>, vector<8x1024xf32>
    %76 = tpu.concatenate %23, %30, %38, %45, %0, %52, %60, %67, %75 in 0 : vector<8x1024xf32>, vector<8x1024xf32>, vector<8x1024xf32>, vector<8x1024xf32>, vector<8x1024xf32>, vector<8x1024xf32>, vector<8x1024xf32>, vector<8x1024xf32>, vector<8x1024xf32> -> vector<72x1024xf32>
    %77 = arith.truncf %76 : vector<72x1024xf32> to vector<72x1024xbf16>
    %c0_10 = arith.constant 0 : index
    %c0_11 = arith.constant 0 : index
    %78 = vector.load %arg2[%c0_10, %c0_11] : memref<64x72xbf16, #tpu.memory_space<vmem>>, vector<64x72xbf16>
    %cst_12 = arith.constant dense<0.000000e+00> : vector<64x1024xf32>
    %79 = tpu.matmul %78, %77, %cst_12 {dimension_numbers = #tpu.dot_dimension_numbers<[1], [0], [0], [1], [0, 0, 1, 1], [], []>} : vector<64x72xbf16>, vector<72x1024xbf16>, vector<64x1024xf32> -> vector<64x1024xf32>
    %c0_13 = arith.constant 0 : index
    %c0_14 = arith.constant 0 : index
    %80 = vector.load %arg3[%c0_13, %c0_14] : memref<64x1xf32, #tpu.memory_space<vmem>>, vector<64x1xf32>
    %81 = vector.broadcast %80 : vector<64x1xf32> to vector<64x1024xf32>
    %82 = arith.addf %79, %81 : vector<64x1024xf32>
    %cst_15 = arith.constant 0.000000e+00 : f32
    %83 = vector.broadcast %cst_15 : f32 to vector<64x1024xf32>
    %84 = arith.maximumf %82, %83 : vector<64x1024xf32>
    %c0_16 = arith.constant 0 : index
    %c0_17 = arith.constant 0 : index
    %85 = vector.load %arg4[%c0_16, %c0_17] : memref<8x64xf32, #tpu.memory_space<vmem>>, vector<8x64xf32>
    %cst_18 = arith.constant dense<0.000000e+00> : vector<8x1024xf32>
    %86 = tpu.matmul %85, %84, %cst_18 {dimension_numbers = #tpu.dot_dimension_numbers<[1], [0], [0], [1], [0, 0, 1, 1], [], []>} : vector<8x64xf32>, vector<64x1024xf32>, vector<8x1024xf32> -> vector<8x1024xf32>
    %c0_19 = arith.constant 0 : index
    %c0_20 = arith.constant 0 : index
    %87 = vector.load %arg6[%c0_19, %c0_20] : memref<1024x128xf32, #tpu.memory_space<vmem>>, vector<1024x128xf32>
    %cst_21 = arith.constant dense<0.000000e+00> : vector<8x128xf32>
    %88 = tpu.matmul %86, %87, %cst_21 {dimension_numbers = #tpu.dot_dimension_numbers<[1], [0], [0], [1], [0, 0, 1, 1], [], []>} : vector<8x1024xf32>, vector<1024x128xf32>, vector<8x128xf32> -> vector<8x128xf32>
    %c0_22 = arith.constant 0 : index
    %c0_23 = arith.constant 0 : index
    %89 = vector.load %arg5[%c0_22, %c0_23] : memref<8x1xf32, #tpu.memory_space<vmem>>, vector<8x1xf32>
    %90 = vector.broadcast %89 : vector<8x1xf32> to vector<8x128xf32>
    %91 = arith.addf %88, %90 : vector<8x128xf32>
    %c0_24 = arith.constant 0 : index
    %c0_25 = arith.constant 0 : index
    %c0_26 = arith.constant 0 : index
    %92 = vector.load %arg7[%c0_24, %c0_25, %c0_26] : memref<1x8x128xf32, #tpu.memory_space<vmem>>, vector<1x8x128xf32>
    %93 = vector.shape_cast %92 : vector<1x8x128xf32> to vector<8x128xf32>
    %94 = vector.shape_cast %91 : vector<8x128xf32> to vector<1x8x128xf32>
    tpu.vector_store %arg7[%c0_24, %c0_25, %c0_26], %94 {strides = array<i32>} : memref<1x8x128xf32, #tpu.memory_space<vmem>>, vector<1x8x128xf32>,
    return
  }
  func.func @transform_0(%arg0: i32) -> (i32, i32) {
    %c0_i32 = arith.constant 0 : i32
    %c0_i32_0 = arith.constant 0 : i32
    return %arg0, %c0_i32 : i32, i32
  }
  func.func @transform_1(%arg0: i32) -> (i32, i32) {
    %c0_i32 = arith.constant 0 : i32
    %c0_i32_0 = arith.constant 0 : i32
    %c0_i32_1 = arith.constant 0 : i32
    return %c0_i32, %c0_i32_0 : i32, i32
  }
  func.func @transform_2(%arg0: i32) -> (i32, i32) {
    %c0_i32 = arith.constant 0 : i32
    %c0_i32_0 = arith.constant 0 : i32
    %c0_i32_1 = arith.constant 0 : i32
    return %c0_i32, %c0_i32_0 : i32, i32
  }
  func.func @transform_3(%arg0: i32) -> (i32, i32) {
    %c0_i32 = arith.constant 0 : i32
    %c0_i32_0 = arith.constant 0 : i32
    %c0_i32_1 = arith.constant 0 : i32
    return %c0_i32, %c0_i32_0 : i32, i32
  }
  func.func @transform_4(%arg0: i32) -> (i32, i32) {
    %c0_i32 = arith.constant 0 : i32
    %c0_i32_0 = arith.constant 0 : i32
    %c0_i32_1 = arith.constant 0 : i32
    return %c0_i32, %c0_i32_0 : i32, i32
  }
  func.func @transform_5(%arg0: i32) -> (i32, i32) {
    %c0_i32 = arith.constant 0 : i32
    %c0_i32_0 = arith.constant 0 : i32
    %c0_i32_1 = arith.constant 0 : i32
    return %c0_i32, %c0_i32_0 : i32, i32
  }
  func.func @transform_6(%arg0: i32) -> (i32, i32, i32) {
    %c0_i32 = arith.constant 0 : i32
    %c0_i32_0 = arith.constant 0 : i32
    %c0_i32_1 = arith.constant 0 : i32
    return %arg0, %c0_i32, %c0_i32_0 : i32, i32, i32
  }
}

</mosaic_0001>

<llo_original>
// kernel: model_2p5d_forward.1
$region0: #{model_2p5d_forward.1}
  #allocation0 [shape = 'u32[]', space=smem, size = 0x4, offset = 0x4, fixed_abs, tag = 'smem constant byte address 0x4 - core index']
  #allocation1 [shape = 'u32[72,128]{1,0:T(1,128)}', space=vmem, size = 0x9000, scoped, tag = 'internal scratch']
  %s0 = inlined_call_operand.vmem [shape: f32[16,1024], index: 0, kind: input, shape index: {}]
  %s1 = inlined_call_operand.vmem [shape: bf16[64,72], index: 1, kind: input, shape index: {}]
  %s2 = inlined_call_operand.vmem [shape: f32[64,1], index: 2, kind: input, shape index: {}]
  %s3 = inlined_call_operand.vmem [shape: f32[8,64], index: 3, kind: input, shape index: {}]
  %s4 = inlined_call_operand.vmem [shape: f32[8,1], index: 4, kind: input, shape index: {}]
  %s5 = inlined_call_operand.vmem [shape: f32[1024,128], index: 5, kind: input, shape index: {}]
  %s6 = inlined_call_operand.vmem [shape: f32[2,8,128], index: 6, kind: output, shape index: {}]
  %s7 = sld [smem:[#allocation0]]
  $region57: #{model_2p5d_forward.1} parent=0
    _
  %s9 = ssub.s32 1, %s7
  %s10 = scalar_select 0, %s9, %s7
  loop: start=0, step=1, limit=4
  $region2: #{model_2p5d_forward.1} parent=0 // loop_pre_header
    _
  $region3: #{model_2p5d_forward.1} parent=0 // loop_header
    %s12 = sphi 0, %s16
    %p13 = scmp.ge.s32.totalorder %s12, 4
    %s22 = sphi 0, %s24
    %s25 = sphi 0, %s22
    %s26 = sphi 0, %s25
    %s42 = sphi 0, %s26
    %s46 = sphi 0, %s46
    %s48 = sphi 0, %s46
    %s49 = sphi 0, %s48
    %s63 = sphi 0, %s49
    %s67 = sphi 0, %s67
    %s69 = sphi 0, %s67
    %s70 = sphi 0, %s69
    %s84 = sphi 0, %s70
    %s88 = sphi 0, %s88
    %s90 = sphi 0, %s88
    %s91 = sphi 0, %s90
    %s105 = sphi 0, %s91
    %s109 = sphi 0, %s109
    %s111 = sphi 0, %s109
    %s112 = sphi 0, %s111
    %s126 = sphi 0, %s112
    %s130 = sphi 0, %s130
    %s132 = sphi 0, %s130
    %s133 = sphi 0, %s132
    %s147 = sphi 0, %s133
    %s153 = sphi 0, %s155
    %s156 = sphi 0, %s153
    %s157 = sphi 0, %s156
    %s173 = sphi 0, %s157
  $region4: #{model_2p5d_forward.1} parent=0 // loop_header_branch
    %15 = sbr.rel (%p13) target = $region8
  $region5: #{model_2p5d_forward.1} parent=0 // loop_body
    %s17 = ssub.s32 %s12, 1
    %s18 = ssub.s32 %s12, 2
    %s19 = sadd.s32 %s12, 1
    %s20 = ssub.s32 %s12, %s19
    %p21 = scmp.eq.s32.totalorder %s20, 0
    %s23 = sadd.s32 %s22, 1
    %s24 = scalar_select %p21, %s22, %s23
    %p27 = pneg %p21
    %p28 = scmp.eq.s32.totalorder %s12, 1
    %p29 = por %p27, %p28
    %p30 = scmp.ne.s32.totalorder %s22, %s25
    %p31 = scmp.eq.s32.totalorder %s12, 0
    %p32 = por %p30, %p31
    %p33 = scmp.ne.s32.totalorder %s22, %s25
    %p34 = scmp.eq.s32.totalorder %s17, 1
    %p35 = por %p33, %p34
    %p36 = scmp.ne.s32.totalorder %s25, %s26
    %p37 = scmp.eq.s32.totalorder %s17, 0
    %p38 = por %p36, %p37
    %p39 = scmp.ne.s32.totalorder %s25, %s26
    %p40 = scmp.eq.s32.totalorder %s18, 1
    %p41 = por %p39, %p40
    %p43 = scmp.ne.s32.totalorder %s26, %s42
    %p44 = scmp.eq.s32.totalorder %s18, 0
    %p45 = por %p43, %p44
    %s47 = sadd.s32 %s46, 1
    %p50 = scmp.eq.s32.totalorder %s12, 1
    %p51 = scmp.ne.s32.totalorder %s46, %s48
    %p52 = scmp.eq.s32.totalorder %s12, 0
    %p53 = por %p51, %p52
    %p54 = scmp.ne.s32.totalorder %s46, %s48
    %p55 = scmp.eq.s32.totalorder %s17, 1
    %p56 = por %p54, %p55
    %p57 = scmp.ne.s32.totalorder %s48, %s49
    %p58 = scmp.eq.s32.totalorder %s17, 0
    %p59 = por %p57, %p58
    %p60 = scmp.ne.s32.totalorder %s48, %s49
    %p61 = scmp.eq.s32.totalorder %s18, 1
    %p62 = por %p60, %p61
    %p64 = scmp.ne.s32.totalorder %s49, %s63
    %p65 = scmp.eq.s32.totalorder %s18, 0
    %p66 = por %p64, %p65
    %s68 = sadd.s32 %s67, 1
    %p71 = scmp.eq.s32.totalorder %s12, 1
    %p72 = scmp.ne.s32.totalorder %s67, %s69
    %p73 = scmp.eq.s32.totalorder %s12, 0
    %p74 = por %p72, %p73
    %p75 = scmp.ne.s32.totalorder %s67, %s69
    %p76 = scmp.eq.s32.totalorder %s17, 1
    %p77 = por %p75, %p76
    %p78 = scmp.ne.s32.totalorder %s69, %s70
    %p79 = scmp.eq.s32.totalorder %s17, 0
    %p80 = por %p78, %p79
    %p81 = scmp.ne.s32.totalorder %s69, %s70
    %p82 = scmp.eq.s32.totalorder %s18, 1
    %p83 = por %p81, %p82
    %p85 = scmp.ne.s32.totalorder %s70, %s84
    %p86 = scmp.eq.s32.totalorder %s18, 0
    %p87 = por %p85, %p86
    %s89 = sadd.s32 %s88, 1
    %p92 = scmp.eq.s32.totalorder %s12, 1
    %p93 = scmp.ne.s32.totalorder %s88, %s90
    %p94 = scmp.eq.s32.totalorder %s12, 0
    %p95 = por %p93, %p94
    %p96 = scmp.ne.s32.totalorder %s88, %s90
    %p97 = scmp.eq.s32.totalorder %s17, 1
    %p98 = por %p96, %p97
    %p99 = scmp.ne.s32.totalorder %s90, %s91
    %p100 = scmp.eq.s32.totalorder %s17, 0
    %p101 = por %p99, %p100
    %p102 = scmp.ne.s32.totalorder %s90, %s91
    %p103 = scmp.eq.s32.totalorder %s18, 1
    %p104 = por %p102, %p103
    %p106 = scmp.ne.s32.totalorder %s91, %s105
    %p107 = scmp.eq.s32.totalorder %s18, 0
    %p108 = por %p106, %p107
    %s110 = sadd.s32 %s109, 1
    %p113 = scmp.eq.s32.totalorder %s12, 1
    %p114 = scmp.ne.s32.totalorder %s109, %s111
    %p115 = scmp.eq.s32.totalorder %s12, 0
    %p116 = por %p114, %p115
    %p117 = scmp.ne.s32.totalorder %s109, %s111
    %p118 = scmp.eq.s32.totalorder %s17, 1
    %p119 = por %p117, %p118
    %p120 = scmp.ne.s32.totalorder %s111, %s112
    %p121 = scmp.eq.s32.totalorder %s17, 0
    %p122 = por %p120, %p121
    %p123 = scmp.ne.s32.totalorder %s111, %s112
    %p124 = scmp.eq.s32.totalorder %s18, 1
    %p125 = por %p123, %p124
    %p127 = scmp.ne.s32.totalorder %s112, %s126
    %p128 = scmp.eq.s32.totalorder %s18, 0
    %p129 = por %p127, %p128
    %s131 = sadd.s32 %s130, 1
    %p134 = scmp.eq.s32.totalorder %s12, 1
    %p135 = scmp.ne.s32.totalorder %s130, %s132
    %p136 = scmp.eq.s32.totalorder %s12, 0
    %p137 = por %p135, %p136
    %p138 = scmp.ne.s32.totalorder %s130, %s132
    %p139 = scmp.eq.s32.totalorder %s17, 1
    %p140 = por %p138, %p139
    %p141 = scmp.ne.s32.totalorder %s132, %s133
    %p142 = scmp.eq.s32.totalorder %s17, 0
    %p143 = por %p141, %p142
    %p144 = scmp.ne.s32.totalorder %s132, %s133
    %p145 = scmp.eq.s32.totalorder %s18, 1
    %p146 = por %p144, %p145
    %p148 = scmp.ne.s32.totalorder %s133, %s147
    %p149 = scmp.eq.s32.totalorder %s18, 0
    %p150 = por %p148, %p149
    %s151 = ssub.s32 %s12, %s19
    %p152 = scmp.eq.s32.totalorder %s151, 0
    %s154 = sadd.s32 %s153, 1
    %s155 = scalar_select %p152, %s153, %s154
    %p158 = pneg %p152
    %p159 = scmp.eq.s32.totalorder %s12, 1
    %p160 = por %p158, %p159
    %p161 = scmp.ne.s32.totalorder %s153, %s156
    %p162 = scmp.eq.s32.totalorder %s12, 0
    %p163 = por %p161, %p162
    %p164 = scmp.ne.s32.totalorder %s153, %s156
    %p165 = scmp.eq.s32.totalorder %s17, 1
    %p166 = por %p164, %p165
    %p167 = scmp.ne.s32.totalorder %s156, %s157
    %p168 = scmp.eq.s32.totalorder %s17, 0
    %p169 = por %p167, %p168
    %p170 = scmp.ne.s32.totalorder %s156, %s157
    %p171 = scmp.eq.s32.totalorder %s18, 1
    %p172 = por %p170, %p171
    %p174 = scmp.ne.s32.totalorder %s157, %s173
    %p175 = scmp.eq.s32.totalorder %s18, 0
    %p176 = por %p174, %p175
    %p177 = scmp.le.s32.totalorder 1, %s12
    %p178 = scmp.lt.s32.totalorder %s12, 3
    %p179 = pnand %p177, %p178
    %p180 = pneg %p179
    // Predicated region
    $region9: #{model_2p5d_forward.1} parent=5 // pred_check
      _
    $region10: #{model_2p5d_forward.1} parent=5 // pred_check_branch
      %182 = sbr.rel (%p179) target = $region12
    $region11: #{model_2p5d_forward.1} parent=5 // pred_region
      %s183 = ssub.s32 %s12, 1
      // Predicated region
      $region13: #{model_2p5d_forward.1} parent=11 // pred_check
        %p184 = pneg %p59
      $region14: #{model_2p5d_forward.1} parent=11 // pred_check_branch
        %186 = sbr.rel (%p184) target = $region16
      $region15: #{model_2p5d_forward.1} parent=11 // pred_region
        _
      $region16: #{model_2p5d_forward.1} parent=11 // pred_fallthru
        _
      // Predicated region
      $region17: #{model_2p5d_forward.1} parent=11 // pred_check
        %p187 = pneg %p80
      $region18: #{model_2p5d_forward.1} parent=11 // pred_check_branch
        %189 = sbr.rel (%p187) target = $region20
      $region19: #{model_2p5d_forward.1} parent=11 // pred_region
        _
      $region20: #{model_2p5d_forward.1} parent=11 // pred_fallthru
        _
      // Predicated region
      $region21: #{model_2p5d_forward.1} parent=11 // pred_check
        %p190 = pneg %p101
      $region22: #{model_2p5d_forward.1} parent=11 // pred_check_branch
        %192 = sbr.rel (%p190) target = $region24
      $region23: #{model_2p5d_forward.1} parent=11 // pred_region
        _
      $region24: #{model_2p5d_forward.1} parent=11 // pred_fallthru
        _
      // Predicated region
      $region25: #{model_2p5d_forward.1} parent=11 // pred_check
        %p193 = pneg %p122
      $region26: #{model_2p5d_forward.1} parent=11 // pred_check_branch
        %195 = sbr.rel (%p193) target = $region28
      $region27: #{model_2p5d_forward.1} parent=11 // pred_region
        _
      $region28: #{model_2p5d_forward.1} parent=11 // pred_fallthru
        _
      // Predicated region
      $region29: #{model_2p5d_forward.1} parent=11 // pred_check
        %p196 = pneg %p143
      $region30: #{model_2p5d_forward.1} parent=11 // pred_check_branch
        %198 = sbr.rel (%p196) target = $region32
      $region31: #{model_2p5d_forward.1} parent=11 // pred_region
        _
      $region32: #{model_2p5d_forward.1} parent=11 // pred_fallthru
        _
    $region12: #{model_2p5d_forward.1} parent=5 // pred_fallthru
      _
    %p199 = scmp.lt.s32.totalorder %s12, 2
    // Predicated region
    $region33: #{model_2p5d_forward.1} parent=5 // pred_check
      %p200 = pneg %p199
    $region34: #{model_2p5d_forward.1} parent=5 // pred_check_branch
      %202 = sbr.rel (%p200) target = $region36
    $region35: #{model_2p5d_forward.1} parent=5 // pred_region
      // Predicated region
      $region37: #{model_2p5d_forward.1} parent=35 // pred_check
        %p203 = pneg %p32
      $region38: #{model_2p5d_forward.1} parent=35 // pred_check_branch
        %205 = sbr.rel (%p203) target = $region40
      $region39: #{model_2p5d_forward.1} parent=35 // pred_region
        %p206 = scmp.lt.s32.totalorder %s12, 1
        %s207 = scalar_select %p206, %s12, 1
        %s208 = smul.addr %s207, 8
        %s209 = smul.addr %s208, 8
        %s210 = scalar_lea.vmem %s0, %s209
      $region40: #{model_2p5d_forward.1} parent=35 // pred_fallthru
        _
    $region36: #{model_2p5d_forward.1} parent=5 // pred_fallthru
      _
    %p211 = scmp.le.s32.totalorder 1, %s12
    %p212 = scmp.lt.s32.totalorder %s12, 3
    %p213 = pnand %p211, %p212
    %p214 = pneg %p213
    // Predicated region
    $region41: #{model_2p5d_forward.1} parent=5 // pred_check
      _
    $region42: #{model_2p5d_forward.1} parent=5 // pred_check_branch
      %216 = sbr.rel (%p213) target = $region44
    $region43: #{model_2p5d_forward.1} parent=5 // pred_region
      %s217 = ssub.s32 %s12, 1
      %p218 = scmp.lt.s32.totalorder %s17, 1
      %s219 = scalar_select %p218, %s17, 1
      %s220 = smul.addr %s219, 8
      %s221 = smul.addr %s220, 8
      %s222 = scalar_lea.vmem %s0, %s221
      %p223 = pneg %p38
      %p224 = pneg %p35
      %p225 = pneg %p59
      %p226 = pneg %p56
      %p227 = pneg %p80
      %p228 = pneg %p77
      %p229 = pneg %p101
      %p230 = pneg %p98
      %p231 = pneg %p122
      %p232 = pneg %p119
      %p233 = pneg %p143
      %p234 = pneg %p140
      %p235 = pneg %p169
      %p236 = pneg %p166
      %p237 = scmp.lt.s32.totalorder %s17, 1
      %s238 = scalar_select %p237, %s17, 1
      %s239 = smul.addr %s238, 8
      %s240 = scalar_lea.vmem %s6, %s239
      %p241 = scmp.lt.s32.totalorder %s17, 1
      %s242 = scalar_select %p241, %s17, 1
      %s243 = smul.addr %s242, 8
      %s244 = smul.addr %s243, 8
      %s245 = scalar_lea.vmem %s0, %s244
      %p246 = scmp.lt.s32.totalorder %s17, 1
      %s247 = scalar_select %p246, %s17, 1
      %s248 = smul.addr %s247, 8
      %s249 = scalar_lea.vmem %s6, %s248
      %v251 = vld [vmem:[%s245] sm:$0xff]
      %v252 = vld [vmem:[%s245 + $0x8] sm:$0xff]
      %v253 = vld [vmem:[%s245 + $0x10] sm:$0xff]
      %v254 = vld [vmem:[%s245 + $0x18] sm:$0xff]
      %v255 = vld [vmem:[%s245 + $0x20] sm:$0xff]
      %v256 = vld [vmem:[%s245 + $0x28] sm:$0xff]
      %v257 = vld [vmem:[%s245 + $0x30] sm:$0xff]
      %v258 = vld [vmem:[%s245 + $0x38] sm:$0xff]
      %v259 = vlaneseq
      %v260 = vand.u32 %v259, 127
      %v261 = vadd.s32 %v260, 128
      %v262 = vadd.s32 %v260, 256
      %v263 = vadd.s32 %v260, 384
      %v264 = vadd.s32 %v260, 512
      %v265 = vadd.s32 %v260, 640
      %v266 = vadd.s32 %v260, 768
      %v267 = vadd.s32 %v260, 896
      %v268 = vand.u32 %v260, 255
      %v269 = vand.u32 %v261, 255
      %v270 = vand.u32 %v262, 255
      %v271 = vand.u32 %v263, 255
      %v272 = vand.u32 %v264, 255
      %v273 = vand.u32 %v265, 255
      %v274 = vand.u32 %v266, 255
      %v275 = vand.u32 %v267, 255
      %v276 = vand.u32 %v268, 15
      %v277 = vand.u32 %v269, 15
      %v278 = vand.u32 %v270, 15
      %v279 = vand.u32 %v271, 15
      %v280 = vand.u32 %v272, 15
      %v281 = vand.u32 %v273, 15
      %v282 = vand.u32 %v274, 15
      %v283 = vand.u32 %v275, 15
      %v284 = vshra.s32 %v268, 4
      %v285 = vshra.s32 %v269, 4
      %v286 = vshra.s32 %v270, 4
      %v287 = vshra.s32 %v271, 4
      %v288 = vshra.s32 %v272, 4
      %v289 = vshra.s32 %v273, 4
      %v290 = vshra.s32 %v274, 4
      %v291 = vshra.s32 %v275, 4
      %vm292 = vcmp.ge.s32.totalorder %v276, 1
      %vm293 = vcmp.ge.s32.totalorder %v277, 1
      %vm294 = vcmp.ge.s32.totalorder %v278, 1
      %vm295 = vcmp.ge.s32.totalorder %v279, 1
      %vm296 = vcmp.ge.s32.totalorder %v280, 1
      %vm297 = vcmp.ge.s32.totalorder %v281, 1
      %vm298 = vcmp.ge.s32.totalorder %v282, 1
      %vm299 = vcmp.ge.s32.totalorder %v283, 1
      %vm300 = vcmp.le.s32.totalorder %v276, 14
      %vm301 = vcmp.le.s32.totalorder %v277, 14
      %vm302 = vcmp.le.s32.totalorder %v278, 14
      %vm303 = vcmp.le.s32.totalorder %v279, 14
      %vm304 = vcmp.le.s32.totalorder %v280, 14
      %vm305 = vcmp.le.s32.totalorder %v281, 14
      %vm306 = vcmp.le.s32.totalorder %v282, 14
      %vm307 = vcmp.le.s32.totalorder %v283, 14
      %vm308 = vcmp.ge.s32.totalorder %v284, 1
      %vm309 = vcmp.ge.s32.totalorder %v285, 1
      %vm310 = vcmp.ge.s32.totalorder %v286, 1
      %vm311 = vcmp.ge.s32.totalorder %v287, 1
      %vm312 = vcmp.ge.s32.totalorder %v288, 1
      %vm313 = vcmp.ge.s32.totalorder %v289, 1
      %vm314 = vcmp.ge.s32.totalorder %v290, 1
      %vm315 = vcmp.ge.s32.totalorder %v291, 1
      %vm316 = vcmp.le.s32.totalorder %v284, 14
      %vm317 = vcmp.le.s32.totalorder %v285, 14
      %vm318 = vcmp.le.s32.totalorder %v286, 14
      %vm319 = vcmp.le.s32.totalorder %v287, 14
      %vm320 = vcmp.le.s32.totalorder %v288, 14
      %vm321 = vcmp.le.s32.totalorder %v289, 14
      %vm322 = vcmp.le.s32.totalorder %v290, 14
      %vm323 = vcmp.le.s32.totalorder %v291, 14
      %325 = vrot.lane.b32.xlu0 %v258, 17
      %v326 = vpop.permute.xlu0 %325
      %335 = vrot.lane.b32.xlu0 %v251, 17
      %v336 = vpop.permute.xlu0 %335
      %337 = vrot.lane.b32.xlu0 %v252, 17
      %v338 = vpop.permute.xlu0 %337
      %339 = vrot.lane.b32.xlu0 %v253, 17
      %v340 = vpop.permute.xlu0 %339
      %341 = vrot.lane.b32.xlu0 %v254, 17
      %v342 = vpop.permute.xlu0 %341
      %343 = vrot.lane.b32.xlu0 %v255, 17
      %v344 = vpop.permute.xlu0 %343
      %345 = vrot.lane.b32.xlu0 %v256, 17
      %v346 = vpop.permute.xlu0 %345
      %347 = vrot.lane.b32.xlu0 %v257, 17
      %v348 = vpop.permute.xlu0 %347
      %vm349 = vcmask 138240
      %v350 = vsel %vm349, %v336, %v338
      %v351 = vsel %vm349, %v338, %v340
      %v352 = vsel %vm349, %v340, %v342
      %v353 = vsel %vm349, %v342, %v344
      %v354 = vsel %vm349, %v344, %v346
      %v355 = vsel %vm349, %v346, %v348
      %v356 = vsel %vm349, %v348, %v326
      %v365 = vsel %vm349, %v326, %v336
      %vm366 = vmand %vm308, %vm292
      %vm367 = vmand %vm309, %vm293
      %vm368 = vmand %vm310, %vm294
      %vm369 = vmand %vm311, %vm295
      %vm370 = vmand %vm312, %vm296
      %vm371 = vmand %vm313, %vm297
      %vm372 = vmand %vm314, %vm298
      %vm373 = vmand %vm315, %vm299
      %v374 = vsel %vm366, 1, 0
      %v375 = vsel %vm367, 1, 0
      %v376 = vsel %vm368, 1, 0
      %v377 = vsel %vm369, 1, 0
      %v378 = vsel %vm370, 1, 0
      %v379 = vsel %vm371, 1, 0
      %v380 = vsel %vm372, 1, 0
      %v381 = vsel %vm373, 1, 0
      %vm382 = vcmp.eq.s32.totalorder %v374, 1
      %vm383 = vcmp.eq.s32.totalorder %v375, 1
      %vm384 = vcmp.eq.s32.totalorder %v376, 1
      %vm385 = vcmp.eq.s32.totalorder %v377, 1
      %vm386 = vcmp.eq.s32.totalorder %v378, 1
      %vm387 = vcmp.eq.s32.totalorder %v379, 1
      %vm388 = vcmp.eq.s32.totalorder %v380, 1
      %vm389 = vcmp.eq.s32.totalorder %v381, 1
      %v390 = vsel %vm382, %v365, 0.0
      %v391 = vsel %vm383, %v350, 0.0
      %v392 = vsel %vm384, %v351, 0.0
      %v393 = vsel %vm385, %v352, 0.0
      %v394 = vsel %vm386, %v353, 0.0
      %v395 = vsel %vm387, %v354, 0.0
      %v396 = vsel %vm388, %v355, 0.0
      %v397 = vsel %vm389, %v356, 0.0
      %398 = vrot.lane.b32.xlu0 %v258, 16
      %v399 = vpop.permute.xlu0 %398
      %401 = vrot.lane.b32.xlu0 %v251, 16
      %v402 = vpop.permute.xlu0 %401
      %403 = vrot.lane.b32.xlu0 %v252, 16
      %v404 = vpop.permute.xlu0 %403
      %405 = vrot.lane.b32.xlu0 %v253, 16
      %v406 = vpop.permute.xlu0 %405
      %407 = vrot.lane.b32.xlu0 %v254, 16
      %v408 = vpop.permute.xlu0 %407
      %409 = vrot.lane.b32.xlu0 %v255, 16
      %v410 = vpop.permute.xlu0 %409
      %411 = vrot.lane.b32.xlu0 %v256, 16
      %v412 = vpop.permute.xlu0 %411
      %413 = vrot.lane.b32.xlu0 %v257, 16
      %v414 = vpop.permute.xlu0 %413
      %vm415 = vcmask 130048
      %v416 = vsel %vm415, %v402, %v404
      %v417 = vsel %vm415, %v404, %v406
      %v418 = vsel %vm415, %v406, %v408
      %v419 = vsel %vm415, %v408, %v410
      %v420 = vsel %vm415, %v410, %v412
      %v421 = vsel %vm415, %v412, %v414
      %v422 = vsel %vm415, %v414, %v399
      %v431 = vsel %vm415, %v399, %v402
      %v432 = vsel %vm308, 1, 0
      %v433 = vsel %vm309, 1, 0
      %v434 = vsel %vm310, 1, 0
      %v435 = vsel %vm311, 1, 0
      %v436 = vsel %vm312, 1, 0
      %v437 = vsel %vm313, 1, 0
      %v438 = vsel %vm314, 1, 0
      %v439 = vsel %vm315, 1, 0
      %vm440 = vcmp.eq.s32.totalorder %v432, 1
      %vm441 = vcmp.eq.s32.totalorder %v433, 1
      %vm442 = vcmp.eq.s32.totalorder %v434, 1
      %vm443 = vcmp.eq.s32.totalorder %v435, 1
      %vm444 = vcmp.eq.s32.totalorder %v436, 1
      %vm445 = vcmp.eq.s32.totalorder %v437, 1
      %vm446 = vcmp.eq.s32.totalorder %v438, 1
      %vm447 = vcmp.eq.s32.totalorder %v439, 1
      %v448 = vsel %vm440, %v431, 0.0
      %v449 = vsel %vm441, %v416, 0.0
      %v450 = vsel %vm442, %v417, 0.0
      %v451 = vsel %vm443, %v418, 0.0
      %v452 = vsel %vm444, %v419, 0.0
      %v453 = vsel %vm445, %v420, 0.0
      %v454 = vsel %vm446, %v421, 0.0
      %v455 = vsel %vm447, %v422, 0.0
      %456 = vrot.lane.b32.xlu0 %v258, 15
      %v457 = vpop.permute.xlu0 %456
      %459 = vrot.lane.b32.xlu0 %v251, 15
      %v460 = vpop.permute.xlu0 %459
      %461 = vrot.lane.b32.xlu0 %v252, 15
      %v462 = vpop.permute.xlu0 %461
      %463 = vrot.lane.b32.xlu0 %v253, 15
      %v464 = vpop.permute.xlu0 %463
      %465 = vrot.lane.b32.xlu0 %v254, 15
      %v466 = vpop.permute.xlu0 %465
      %467 = vrot.lane.b32.xlu0 %v255, 15
      %v468 = vpop.permute.xlu0 %467
      %469 = vrot.lane.b32.xlu0 %v256, 15
      %v470 = vpop.permute.xlu0 %469
      %471 = vrot.lane.b32.xlu0 %v257, 15
      %v472 = vpop.permute.xlu0 %471
      %vm473 = vcmask 121856
      %v474 = vsel %vm473, %v460, %v462
      %v475 = vsel %vm473, %v462, %v464
      %v476 = vsel %vm473, %v464, %v466
      %v477 = vsel %vm473, %v466, %v468
      %v478 = vsel %vm473, %v468, %v470
      %v479 = vsel %vm473, %v470, %v472
      %v480 = vsel %vm473, %v472, %v457
      %v489 = vsel %vm473, %v457, %v460
      %vm490 = vmand %vm308, %vm300
      %vm491 = vmand %vm309, %vm301
      %vm492 = vmand %vm310, %vm302
      %vm493 = vmand %vm311, %vm303
      %vm494 = vmand %vm312, %vm304
      %vm495 = vmand %vm313, %vm305
      %vm496 = vmand %vm314, %vm306
      %vm497 = vmand %vm315, %vm307
      %v498 = vsel %vm490, 1, 0
      %v499 = vsel %vm491, 1, 0
      %v500 = vsel %vm492, 1, 0
      %v501 = vsel %vm493, 1, 0
      %v502 = vsel %vm494, 1, 0
      %v503 = vsel %vm495, 1, 0
      %v504 = vsel %vm496, 1, 0
      %v505 = vsel %vm497, 1, 0
      %vm506 = vcmp.eq.s32.totalorder %v498, 1
      %vm507 = vcmp.eq.s32.totalorder %v499, 1
      %vm508 = vcmp.eq.s32.totalorder %v500, 1
      %vm509 = vcmp.eq.s32.totalorder %v501, 1
      %vm510 = vcmp.eq.s32.totalorder %v502, 1
      %vm511 = vcmp.eq.s32.totalorder %v503, 1
      %vm512 = vcmp.eq.s32.totalorder %v504, 1
      %vm513 = vcmp.eq.s32.totalorder %v505, 1
      %v514 = vsel %vm506, %v489, 0.0
      %v515 = vsel %vm507, %v474, 0.0
      %v516 = vsel %vm508, %v475, 0.0
      %v517 = vsel %vm509, %v476, 0.0
      %v518 = vsel %vm510, %v477, 0.0
      %v519 = vsel %vm511, %v478, 0.0
      %v520 = vsel %vm512, %v479, 0.0
      %v521 = vsel %vm513, %v480, 0.0
      %522 = vrot.lane.b32.xlu0 %v258, 1
      %v523 = vpop.permute.xlu0 %522
      %525 = vrot.lane.b32.xlu0 %v251, 1
      %v526 = vpop.permute.xlu0 %525
      %527 = vrot.lane.b32.xlu0 %v252, 1
      %v528 = vpop.permute.xlu0 %527
      %529 = vrot.lane.b32.xlu0 %v253, 1
      %v530 = vpop.permute.xlu0 %529
      %531 = vrot.lane.b32.xlu0 %v254, 1
      %v532 = vpop.permute.xlu0 %531
      %533 = vrot.lane.b32.xlu0 %v255, 1
      %v534 = vpop.permute.xlu0 %533
      %535 = vrot.lane.b32.xlu0 %v256, 1
      %v536 = vpop.permute.xlu0 %535
      %537 = vrot.lane.b32.xlu0 %v257, 1
      %v538 = vpop.permute.xlu0 %537
      %vm539 = vcmask 7168
      %v540 = vsel %vm539, %v526, %v528
      %v541 = vsel %vm539, %v528, %v530
      %v542 = vsel %vm539, %v530, %v532
      %v543 = vsel %vm539, %v532, %v534
      %v544 = vsel %vm539, %v534, %v536
      %v545 = vsel %vm539, %v536, %v538
      %v546 = vsel %vm539, %v538, %v523
      %v555 = vsel %vm539, %v523, %v526
      %v556 = vsel %vm292, 1, 0
      %v557 = vsel %vm293, 1, 0
      %v558 = vsel %vm294, 1, 0
      %v559 = vsel %vm295, 1, 0
      %v560 = vsel %vm296, 1, 0
      %v561 = vsel %vm297, 1, 0
      %v562 = vsel %vm298, 1, 0
      %v563 = vsel %vm299, 1, 0
      %vm564 = vcmp.eq.s32.totalorder %v556, 1
      %vm565 = vcmp.eq.s32.totalorder %v557, 1
      %vm566 = vcmp.eq.s32.totalorder %v558, 1
      %vm567 = vcmp.eq.s32.totalorder %v559, 1
      %vm568 = vcmp.eq.s32.totalorder %v560, 1
      %vm569 = vcmp.eq.s32.totalorder %v561, 1
      %vm570 = vcmp.eq.s32.totalorder %v562, 1
      %vm571 = vcmp.eq.s32.totalorder %v563, 1
      %v572 = vsel %vm564, %v555, 0.0
      %v573 = vsel %vm565, %v540, 0.0
      %v574 = vsel %vm566, %v541, 0.0
      %v575 = vsel %vm567, %v542, 0.0
      %v576 = vsel %vm568, %v543, 0.0
      %v577 = vsel %vm569, %v544, 0.0
      %v578 = vsel %vm570, %v545, 0.0
      %v579 = vsel %vm571, %v546, 0.0
      %580 = vrot.lane.b32.xlu0 %v251, 127
      %v581 = vpop.permute.xlu0 %580
      %582 = vrot.lane.b32.xlu0 %v252, 127
      %v583 = vpop.permute.xlu0 %582
      %584 = vrot.lane.b32.xlu0 %v253, 127
      %v585 = vpop.permute.xlu0 %584
      %586 = vrot.lane.b32.xlu0 %v254, 127
      %v587 = vpop.permute.xlu0 %586
      %588 = vrot.lane.b32.xlu0 %v255, 127
      %v589 = vpop.permute.xlu0 %588
      %590 = vrot.lane.b32.xlu0 %v256, 127
      %v591 = vpop.permute.xlu0 %590
      %592 = vrot.lane.b32.xlu0 %v257, 127
      %v593 = vpop.permute.xlu0 %592
      %594 = vrot.lane.b32.xlu0 %v258, 127
      %v595 = vpop.permute.xlu0 %594
      %vm596 = vcmask 1039360
      %v597 = vsel %vm596, %v581, %v583
      %v598 = vsel %vm596, %v583, %v585
      %v599 = vsel %vm596, %v585, %v587
      %v600 = vsel %vm596, %v587, %v589
      %v601 = vsel %vm596, %v589, %v591
      %v602 = vsel %vm596, %v591, %v593
      %v603 = vsel %vm596, %v593, %v595
      %v613 = vsel %vm596, %v595, %v581
      %v614 = vsel %vm300, 1, 0
      %v615 = vsel %vm301, 1, 0
      %v616 = vsel %vm302, 1, 0
      %v617 = vsel %vm303, 1, 0
      %v618 = vsel %vm304, 1, 0
      %v619 = vsel %vm305, 1, 0
      %v620 = vsel %vm306, 1, 0
      %v621 = vsel %vm307, 1, 0
      %vm622 = vcmp.eq.s32.totalorder %v614, 1
      %vm623 = vcmp.eq.s32.totalorder %v615, 1
      %vm624 = vcmp.eq.s32.totalorder %v616, 1
      %vm625 = vcmp.eq.s32.totalorder %v617, 1
      %vm626 = vcmp.eq.s32.totalorder %v618, 1
      %vm627 = vcmp.eq.s32.totalorder %v619, 1
      %vm628 = vcmp.eq.s32.totalorder %v620, 1
      %vm629 = vcmp.eq.s32.totalorder %v621, 1
      %v630 = vsel %vm622, %v597, 0.0
      %v631 = vsel %vm623, %v598, 0.0
      %v632 = vsel %vm624, %v599, 0.0
      %v633 = vsel %vm625, %v600, 0.0
      %v634 = vsel %vm626, %v601, 0.0
      %v635 = vsel %vm627, %v602, 0.0
      %v636 = vsel %vm628, %v603, 0.0
      %v637 = vsel %vm629, %v613, 0.0
      %638 = vrot.lane.b32.xlu0 %v251, 113
      %v639 = vpop.permute.xlu0 %638
      %640 = vrot.lane.b32.xlu0 %v252, 113
      %v641 = vpop.permute.xlu0 %640
      %642 = vrot.lane.b32.xlu0 %v253, 113
      %v643 = vpop.permute.xlu0 %642
      %644 = vrot.lane.b32.xlu0 %v254, 113
      %v645 = vpop.permute.xlu0 %644
      %646 = vrot.lane.b32.xlu0 %v255, 113
      %v647 = vpop.permute.xlu0 %646
      %648 = vrot.lane.b32.xlu0 %v256, 113
      %v649 = vpop.permute.xlu0 %648
      %650 = vrot.lane.b32.xlu0 %v257, 113
      %v651 = vpop.permute.xlu0 %650
      %652 = vrot.lane.b32.xlu0 %v258, 113
      %v653 = vpop.permute.xlu0 %652
      %vm654 = vcmask 924672
      %v655 = vsel %vm654, %v639, %v641
      %v656 = vsel %vm654, %v641, %v643
      %v657 = vsel %vm654, %v643, %v645
      %v658 = vsel %vm654, %v645, %v647
      %v659 = vsel %vm654, %v647, %v649
      %v660 = vsel %vm654, %v649, %v651
      %v661 = vsel %vm654, %v651, %v653
      %v671 = vsel %vm654, %v653, %v639
      %vm672 = vmand %vm316, %vm292
      %vm673 = vmand %vm317, %vm293
      %vm674 = vmand %vm318, %vm294
      %vm675 = vmand %vm319, %vm295
      %vm676 = vmand %vm320, %vm296
      %vm677 = vmand %vm321, %vm297
      %vm678 = vmand %vm322, %vm298
      %vm679 = vmand %vm323, %vm299
      %v680 = vsel %vm672, 1, 0
      %v681 = vsel %vm673, 1, 0
      %v682 = vsel %vm674, 1, 0
      %v683 = vsel %vm675, 1, 0
      %v684 = vsel %vm676, 1, 0
      %v685 = vsel %vm677, 1, 0
      %v686 = vsel %vm678, 1, 0
      %v687 = vsel %vm679, 1, 0
      %vm688 = vcmp.eq.s32.totalorder %v680, 1
      %vm689 = vcmp.eq.s32.totalorder %v681, 1
      %vm690 = vcmp.eq.s32.totalorder %v682, 1
      %vm691 = vcmp.eq.s32.totalorder %v683, 1
      %vm692 = vcmp.eq.s32.totalorder %v684, 1
      %vm693 = vcmp.eq.s32.totalorder %v685, 1
      %vm694 = vcmp.eq.s32.totalorder %v686, 1
      %vm695 = vcmp.eq.s32.totalorder %v687, 1
      %v696 = vsel %vm688, %v655, 0.0
      %v697 = vsel %vm689, %v656, 0.0
      %v698 = vsel %vm690, %v657, 0.0
      %v699 = vsel %vm691, %v658, 0.0
      %v700 = vsel %vm692, %v659, 0.0
      %v701 = vsel %vm693, %v660, 0.0
      %v702 = vsel %vm694, %v661, 0.0
      %v703 = vsel %vm695, %v671, 0.0
      %704 = vrot.lane.b32.xlu0 %v251, 112
      %v705 = vpop.permute.xlu0 %704
      %706 = vrot.lane.b32.xlu0 %v252, 112
      %v707 = vpop.permute.xlu0 %706
      %708 = vrot.lane.b32.xlu0 %v253, 112
      %v709 = vpop.permute.xlu0 %708
      %710 = vrot.lane.b32.xlu0 %v254, 112
      %v711 = vpop.permute.xlu0 %710
      %712 = vrot.lane.b32.xlu0 %v255, 112
      %v713 = vpop.permute.xlu0 %712
      %714 = vrot.lane.b32.xlu0 %v256, 112
      %v715 = vpop.permute.xlu0 %714
      %716 = vrot.lane.b32.xlu0 %v257, 112
      %v717 = vpop.permute.xlu0 %716
      %718 = vrot.lane.b32.xlu0 %v258, 112
      %v719 = vpop.permute.xlu0 %718
      %vm720 = vcmask 916480
      %v721 = vsel %vm720, %v705, %v707
      %v722 = vsel %vm720, %v707, %v709
      %v723 = vsel %vm720, %v709, %v711
      %v724 = vsel %vm720, %v711, %v713
      %v725 = vsel %vm720, %v713, %v715
      %v726 = vsel %vm720, %v715, %v717
      %v727 = vsel %vm720, %v717, %v719
      %v737 = vsel %vm720, %v719, %v705
      %v738 = vsel %vm316, 1, 0
      %v739 = vsel %vm317, 1, 0
      %v740 = vsel %vm318, 1, 0
      %v741 = vsel %vm319, 1, 0
      %v742 = vsel %vm320, 1, 0
      %v743 = vsel %vm321, 1, 0
      %v744 = vsel %vm322, 1, 0
      %v745 = vsel %vm323, 1, 0
      %vm746 = vcmp.eq.s32.totalorder %v738, 1
      %vm747 = vcmp.eq.s32.totalorder %v739, 1
      %vm748 = vcmp.eq.s32.totalorder %v740, 1
      %vm749 = vcmp.eq.s32.totalorder %v741, 1
      %vm750 = vcmp.eq.s32.totalorder %v742, 1
      %vm751 = vcmp.eq.s32.totalorder %v743, 1
      %vm752 = vcmp.eq.s32.totalorder %v744, 1
      %vm753 = vcmp.eq.s32.totalorder %v745, 1
      %v754 = vsel %vm746, %v721, 0.0
      %v755 = vsel %vm747, %v722, 0.0
      %v756 = vsel %vm748, %v723, 0.0
      %v757 = vsel %vm749, %v724, 0.0
      %v758 = vsel %vm750, %v725, 0.0
      %v759 = vsel %vm751, %v726, 0.0
      %v760 = vsel %vm752, %v727, 0.0
      %v761 = vsel %vm753, %v737, 0.0
      %762 = vrot.lane.b32.xlu0 %v251, 111
      %v763 = vpop.permute.xlu0 %762
      %764 = vrot.lane.b32.xlu0 %v252, 111
      %v765 = vpop.permute.xlu0 %764
      %766 = vrot.lane.b32.xlu0 %v253, 111
      %v767 = vpop.permute.xlu0 %766
      %768 = vrot.lane.b32.xlu0 %v254, 111
      %v769 = vpop.permute.xlu0 %768
      %770 = vrot.lane.b32.xlu0 %v255, 111
      %v771 = vpop.permute.xlu0 %770
      %772 = vrot.lane.b32.xlu0 %v256, 111
      %v773 = vpop.permute.xlu0 %772
      %774 = vrot.lane.b32.xlu0 %v257, 111
      %v775 = vpop.permute.xlu0 %774
      %776 = vrot.lane.b32.xlu0 %v258, 111
      %v777 = vpop.permute.xlu0 %776
      %vm778 = vcmask 908288
      %v779 = vsel %vm778, %v763, %v765
      %v780 = vsel %vm778, %v765, %v767
      %v781 = vsel %vm778, %v767, %v769
      %v782 = vsel %vm778, %v769, %v771
      %v783 = vsel %vm778, %v771, %v773
      %v784 = vsel %vm778, %v773, %v775
      %v785 = vsel %vm778, %v775, %v777
      %v795 = vsel %vm778, %v777, %v763
      %vm796 = vmand %vm316, %vm300
      %vm797 = vmand %vm317, %vm301
      %vm798 = vmand %vm318, %vm302
      %vm799 = vmand %vm319, %vm303
      %vm800 = vmand %vm320, %vm304
      %vm801 = vmand %vm321, %vm305
      %vm802 = vmand %vm322, %vm306
      %vm803 = vmand %vm323, %vm307
      %v804 = vsel %vm796, 1, 0
      %v805 = vsel %vm797, 1, 0
      %v806 = vsel %vm798, 1, 0
      %v807 = vsel %vm799, 1, 0
      %v808 = vsel %vm800, 1, 0
      %v809 = vsel %vm801, 1, 0
      %v810 = vsel %vm802, 1, 0
      %v811 = vsel %vm803, 1, 0
      %vm812 = vcmp.eq.s32.totalorder %v804, 1
      %vm813 = vcmp.eq.s32.totalorder %v805, 1
      %vm814 = vcmp.eq.s32.totalorder %v806, 1
      %vm815 = vcmp.eq.s32.totalorder %v807, 1
      %vm816 = vcmp.eq.s32.totalorder %v808, 1
      %vm817 = vcmp.eq.s32.totalorder %v809, 1
      %vm818 = vcmp.eq.s32.totalorder %v810, 1
      %vm819 = vcmp.eq.s32.totalorder %v811, 1
      %v820 = vsel %vm812, %v779, 0.0
      %v821 = vsel %vm813, %v780, 0.0
      %v822 = vsel %vm814, %v781, 0.0
      %v823 = vsel %vm815, %v782, 0.0
      %v824 = vsel %vm816, %v783, 0.0
      %v825 = vsel %vm817, %v784, 0.0
      %v826 = vsel %vm818, %v785, 0.0
      %v827 = vsel %vm819, %v795, 0.0
      %v828 = vpack.c.bf16 %v448, %v390
      %v829 = vpack.c.bf16 %v449, %v391
      %v830 = vpack.c.bf16 %v450, %v392
      %v831 = vpack.c.bf16 %v451, %v393
      %v832 = vpack.c.bf16 %v452, %v394
      %v833 = vpack.c.bf16 %v453, %v395
      %v834 = vpack.c.bf16 %v454, %v396
      %v835 = vpack.c.bf16 %v455, %v397
      %v836 = vpack.c.bf16 %v572, %v514
      %v837 = vpack.c.bf16 %v573, %v515
      %v838 = vpack.c.bf16 %v574, %v516
      %v839 = vpack.c.bf16 %v575, %v517
      %v840 = vpack.c.bf16 %v576, %v518
      %v841 = vpack.c.bf16 %v577, %v519
      %v842 = vpack.c.bf16 %v578, %v520
      %v843 = vpack.c.bf16 %v579, %v521
      %v844 = vpack.c.bf16 %v630, %v251
      %v845 = vpack.c.bf16 %v631, %v252
      %v846 = vpack.c.bf16 %v632, %v253
      %v847 = vpack.c.bf16 %v633, %v254
      %v848 = vpack.c.bf16 %v634, %v255
      %v849 = vpack.c.bf16 %v635, %v256
      %v850 = vpack.c.bf16 %v636, %v257
      %v851 = vpack.c.bf16 %v637, %v258
      %v852 = vpack.c.bf16 %v754, %v696
      %v853 = vpack.c.bf16 %v755, %v697
      %v854 = vpack.c.bf16 %v756, %v698
      %v855 = vpack.c.bf16 %v757, %v699
      %v856 = vpack.c.bf16 %v758, %v700
      %v857 = vpack.c.bf16 %v759, %v701
      %v858 = vpack.c.bf16 %v760, %v702
      %v859 = vpack.c.bf16 %v761, %v703
      %v860 = vpack.c.bf16 %v820, %v820
      %v861 = vpack.c.bf16 %v821, %v821
      %v862 = vpack.c.bf16 %v822, %v822
      %v863 = vpack.c.bf16 %v823, %v823
      %v864 = vpack.c.bf16 %v824, %v824
      %v865 = vpack.c.bf16 %v825, %v825
      %v866 = vpack.c.bf16 %v826, %v826
      %v867 = vpack.c.bf16 %v827, %v827
      %v868 = vld [vmem:[%s1] sm:$0xf]
      %v869 = vld [vmem:[%s1 + $0x4] sm:$0xf]
      %v870 = vld [vmem:[%s1 + $0x8] sm:$0xf]
      %v871 = vld [vmem:[%s1 + $0xc] sm:$0xf]
      %v872 = vld [vmem:[%s1 + $0x10] sm:$0xf]
      %v873 = vld [vmem:[%s1 + $0x14] sm:$0xf]
      %v874 = vld [vmem:[%s1 + $0x18] sm:$0xf]
      %v875 = vld [vmem:[%s1 + $0x1c] sm:$0xf]
      %v876 = vld [vmem:[%s2] sm:$0xff]
      %v877 = vld [vmem:[%s2 + $0x8] sm:$0xff]
      %v878 = vld [vmem:[%s2 + $0x10] sm:$0xff]
      %v879 = vld [vmem:[%s2 + $0x18] sm:$0xff]
      %v880 = vld [vmem:[%s2 + $0x20] sm:$0xff]
      %v881 = vld [vmem:[%s2 + $0x28] sm:$0xff]
      %v882 = vld [vmem:[%s2 + $0x30] sm:$0xff]
      %v883 = vld [vmem:[%s2 + $0x38] sm:$0xff]
      %885 = vset.pattern.permute.xlu0 0
      %886 = vperm.xlu0 %885, %v876
      %v887 = vpop.permute.xlu0 %886
      %890 = vset.pattern.permute.xlu0 0
      %891 = vperm.xlu0 %890, %v877
      %v892 = vpop.permute.xlu0 %891
      %895 = vset.pattern.permute.xlu0 0
      %896 = vperm.xlu0 %895, %v878
      %v897 = vpop.permute.xlu0 %896
      %900 = vset.pattern.permute.xlu0 0
      %901 = vperm.xlu0 %900, %v879
      %v902 = vpop.permute.xlu0 %901
      %905 = vset.pattern.permute.xlu0 0
      %906 = vperm.xlu0 %905, %v880
      %v907 = vpop.permute.xlu0 %906
      %910 = vset.pattern.permute.xlu0 0
      %911 = vperm.xlu0 %910, %v881
      %v912 = vpop.permute.xlu0 %911
      %915 = vset.pattern.permute.xlu0 0
      %916 = vperm.xlu0 %915, %v882
      %v917 = vpop.permute.xlu0 %916
      %920 = vset.pattern.permute.xlu0 0
      %921 = vperm.xlu0 %920, %v883
      %v922 = vpop.permute.xlu0 %921
      %v932 = vunpack.c.l.b16 %v868
      %v933 = vunpack.c.l.b16 %v869
      %v934 = vunpack.c.l.b16 %v870
      %v935 = vunpack.c.l.b16 %v871
      %v936 = vunpack.c.l.b16 %v872
      %v937 = vunpack.c.l.b16 %v873
      %v938 = vunpack.c.l.b16 %v874
      %v939 = vunpack.c.l.b16 %v875
      %v940 = vpack.c.b16 %v933, %v932
      %v941 = vpack.c.b16 %v935, %v934
      %v942 = vpack.c.b16 %v937, %v936
      %v943 = vpack.c.b16 %v939, %v938
      %vm944 = vcmask 588800
      %v946 = vsel %vm944, %v940, 0
      %v949 = vsel %vm944, %v941, 0
      %v952 = vsel %vm944, %v942, 0
      %v955 = vsel %vm944, %v943, 0
      %vm957 = vcmask 1043456
      %v959 = vsel %vm957, %v860, 0
      %v962 = vsel %vm957, %v861, 0
      %v965 = vsel %vm957, %v862, 0
      %v968 = vsel %vm957, %v863, 0
      %v971 = vsel %vm957, %v864, 0
      %v974 = vsel %vm957, %v865, 0
      %v977 = vsel %vm957, %v866, 0
      %v980 = vsel %vm957, %v867, 0
      %982 = vmatpush.bf16.msra.mxu0 0
      %983 = vmatpush.bf16.msra.mxu0 0
      %984 = vmatpush.bf16.msra.mxu0 0
      %985 = vmatpush.bf16.msra.mxu0 %v959
      %986 = vmatpush.bf16.msra.mxu0 %v852
      %987 = vmatpush.bf16.msra.mxu0 %v844
      %988 = vmatpush.bf16.msra.mxu0 %v836
      %989 = vmatpush.bf16.msra.mxu0 %v828
      %990 = vmatmul.bf16.gmra.mxu0 %v946
      %v991 = vpop.f32.mrf.mxu0
      %v992 = vadd.f32 %v887, %v991
      %v993 = vpop.f32.mrf.mxu0
      %v994 = vadd.f32 %v892, %v993
      %995 = vmatmul.bf16.gmra.mxu0 %v949
      %v996 = vpop.f32.mrf.mxu0
      %v997 = vadd.f32 %v897, %v996
      %v998 = vpop.f32.mrf.mxu0
      %v999 = vadd.f32 %v902, %v998
      %1000 = vmatmul.bf16.gmra.mxu0 %v952
      %v1001 = vpop.f32.mrf.mxu0
      %v1002 = vadd.f32 %v907, %v1001
      %v1003 = vpop.f32.mrf.mxu0
      %v1004 = vadd.f32 %v912, %v1003
      %1005 = vmatmul.bf16.gmra.mxu0 %v955
      %v1006 = vpop.f32.mrf.mxu0
      %v1007 = vadd.f32 %v917, %v1006
      %v1008 = vpop.f32.mrf.mxu0
      %v1009 = vadd.f32 %v922, %v1008
      %1010 = vdwg.mxu0
      %1011 = vmatpush.bf16.msra.mxu0 0
      %1012 = vmatpush.bf16.msra.mxu0 0
      %1013 = vmatpush.bf16.msra.mxu0 0
      %1014 = vmatpush.bf16.msra.mxu0 %v962
      %1015 = vmatpush.bf16.msra.mxu0 %v853
      %1016 = vmatpush.bf16.msra.mxu0 %v845
      %1017 = vmatpush.bf16.msra.mxu0 %v837
      %1018 = vmatpush.bf16.msra.mxu0 %v829
      %1019 = vmatmul.bf16.gmra.mxu0 %v946
      %v1020 = vpop.f32.mrf.mxu0
      %v1021 = vadd.f32 %v887, %v1020
      %v1022 = vpop.f32.mrf.mxu0
      %v1023 = vadd.f32 %v892, %v1022
      %1024 = vmatmul.bf16.gmra.mxu0 %v949
      %v1025 = vpop.f32.mrf.mxu0
      %v1026 = vadd.f32 %v897, %v1025
      %v1027 = vpop.f32.mrf.mxu0
      %v1028 = vadd.f32 %v902, %v1027
      %1029 = vmatmul.bf16.gmra.mxu0 %v952
      %v1030 = vpop.f32.mrf.mxu0
      %v1031 = vadd.f32 %v907, %v1030
      %v1032 = vpop.f32.mrf.mxu0
      %v1033 = vadd.f32 %v912, %v1032
      %1034 = vmatmul.bf16.gmra.mxu0 %v955
      %v1035 = vpop.f32.mrf.mxu0
      %v1036 = vadd.f32 %v917, %v1035
      %v1037 = vpop.f32.mrf.mxu0
      %v1038 = vadd.f32 %v922, %v1037
      %1039 = vdwg.mxu0
      %1040 = vmatpush.bf16.msra.mxu0 0
      %1041 = vmatpush.bf16.msra.mxu0 0
      %1042 = vmatpush.bf16.msra.mxu0 0
      %1043 = vmatpush.bf16.msra.mxu0 %v965
      %1044 = vmatpush.bf16.msra.mxu0 %v854
      %1045 = vmatpush.bf16.msra.mxu0 %v846
      %1046 = vmatpush.bf16.msra.mxu0 %v838
      %1047 = vmatpush.bf16.msra.mxu0 %v830
      %1048 = vmatmul.bf16.gmra.mxu0 %v946
      %v1049 = vpop.f32.mrf.mxu0
      %v1050 = vadd.f32 %v887, %v1049
      %v1051 = vpop.f32.mrf.mxu0
      %v1052 = vadd.f32 %v892, %v1051
      %1053 = vmatmul.bf16.gmra.mxu0 %v949
      %v1054 = vpop.f32.mrf.mxu0
      %v1055 = vadd.f32 %v897, %v1054
      %v1056 = vpop.f32.mrf.mxu0
      %v1057 = vadd.f32 %v902, %v1056
      %1058 = vmatmul.bf16.gmra.mxu0 %v952
      %v1059 = vpop.f32.mrf.mxu0
      %v1060 = vadd.f32 %v907, %v1059
      %v1061 = vpop.f32.mrf.mxu0
      %v1062 = vadd.f32 %v912, %v1061
      %1063 = vmatmul.bf16.gmra.mxu0 %v955
      %v1064 = vpop.f32.mrf.mxu0
      %v1065 = vadd.f32 %v917, %v1064
      %v1066 = vpop.f32.mrf.mxu0
      %v1067 = vadd.f32 %v922, %v1066
      %1068 = vdwg.mxu0
      %1069 = vmatpush.bf16.msra.mxu0 0
      %1070 = vmatpush.bf16.msra.mxu0 0
      %1071 = vmatpush.bf16.msra.mxu0 0
      %1072 = vmatpush.bf16.msra.mxu0 %v968
      %1073 = vmatpush.bf16.msra.mxu0 %v855
      %1074 = vmatpush.bf16.msra.mxu0 %v847
      %1075 = vmatpush.bf16.msra.mxu0 %v839
      %1076 = vmatpush.bf16.msra.mxu0 %v831
      %1077 = vmatmul.bf16.gmra.mxu0 %v946
      %v1078 = vpop.f32.mrf.mxu0
      %v1079 = vadd.f32 %v887, %v1078
      %v1080 = vpop.f32.mrf.mxu0
      %v1081 = vadd.f32 %v892, %v1080
      %1082 = vmatmul.bf16.gmra.mxu0 %v949
      %v1083 = vpop.f32.mrf.mxu0
      %v1084 = vadd.f32 %v897, %v1083
      %v1085 = vpop.f32.mrf.mxu0
      %v1086 = vadd.f32 %v902, %v1085
      %1087 = vmatmul.bf16.gmra.mxu0 %v952
      %v1088 = vpop.f32.mrf.mxu0
      %v1089 = vadd.f32 %v907, %v1088
      %v1090 = vpop.f32.mrf.mxu0
      %v1091 = vadd.f32 %v912, %v1090
      %1092 = vmatmul.bf16.gmra.mxu0 %v955
      %v1093 = vpop.f32.mrf.mxu0
      %v1094 = vadd.f32 %v917, %v1093
      %v1095 = vpop.f32.mrf.mxu0
      %v1096 = vadd.f32 %v922, %v1095
      %1097 = vdwg.mxu0
      %1098 = vmatpush.bf16.msra.mxu0 0
      %1099 = vmatpush.bf16.msra.mxu0 0
      %1100 = vmatpush.bf16.msra.mxu0 0
      %1101 = vmatpush.bf16.msra.mxu0 %v971
      %1102 = vmatpush.bf16.msra.mxu0 %v856
      %1103 = vmatpush.bf16.msra.mxu0 %v848
      %1104 = vmatpush.bf16.msra.mxu0 %v840
      %1105 = vmatpush.bf16.msra.mxu0 %v832
      %1106 = vmatmul.bf16.gmra.mxu0 %v946
      %v1107 = vpop.f32.mrf.mxu0
      %v1108 = vadd.f32 %v887, %v1107
      %v1109 = vpop.f32.mrf.mxu0
      %v1110 = vadd.f32 %v892, %v1109
      %1111 = vmatmul.bf16.gmra.mxu0 %v949
      %v1112 = vpop.f32.mrf.mxu0
      %v1113 = vadd.f32 %v897, %v1112
      %v1114 = vpop.f32.mrf.mxu0
      %v1115 = vadd.f32 %v902, %v1114
      %1116 = vmatmul.bf16.gmra.mxu0 %v952
      %v1117 = vpop.f32.mrf.mxu0
      %v1118 = vadd.f32 %v907, %v1117
      %v1119 = vpop.f32.mrf.mxu0
      %v1120 = vadd.f32 %v912, %v1119
      %1121 = vmatmul.bf16.gmra.mxu0 %v955
      %v1122 = vpop.f32.mrf.mxu0
      %v1123 = vadd.f32 %v917, %v1122
      %v1124 = vpop.f32.mrf.mxu0
      %v1125 = vadd.f32 %v922, %v1124
      %1126 = vdwg.mxu0
      %1127 = vmatpush.bf16.msra.mxu0 0
      %1128 = vmatpush.bf16.msra.mxu0 0
      %1129 = vmatpush.bf16.msra.mxu0 0
      %1130 = vmatpush.bf16.msra.mxu0 %v974
      %1131 = vmatpush.bf16.msra.mxu0 %v857
      %1132 = vmatpush.bf16.msra.mxu0 %v849
      %1133 = vmatpush.bf16.msra.mxu0 %v841
      %1134 = vmatpush.bf16.msra.mxu0 %v833
      %1135 = vmatmul.bf16.gmra.mxu0 %v946
      %v1136 = vpop.f32.mrf.mxu0
      %v1137 = vadd.f32 %v887, %v1136
      %v1138 = vpop.f32.mrf.mxu0
      %v1139 = vadd.f32 %v892, %v1138
      %1140 = vmatmul.bf16.gmra.mxu0 %v949
      %v1141 = vpop.f32.mrf.mxu0
      %v1142 = vadd.f32 %v897, %v1141
      %v1143 = vpop.f32.mrf.mxu0
      %v1144 = vadd.f32 %v902, %v1143
      %1145 = vmatmul.bf16.gmra.mxu0 %v952
      %v1146 = vpop.f32.mrf.mxu0
      %v1147 = vadd.f32 %v907, %v1146
      %v1148 = vpop.f32.mrf.mxu0
      %v1149 = vadd.f32 %v912, %v1148
      %1150 = vmatmul.bf16.gmra.mxu0 %v955
      %v1151 = vpop.f32.mrf.mxu0
      %v1152 = vadd.f32 %v917, %v1151
      %v1153 = vpop.f32.mrf.mxu0
      %v1154 = vadd.f32 %v922, %v1153
      %1155 = vdwg.mxu0
      %1156 = vmatpush.bf16.msra.mxu0 0
      %1157 = vmatpush.bf16.msra.mxu0 0
      %1158 = vmatpush.bf16.msra.mxu0 0
      %1159 = vmatpush.bf16.msra.mxu0 %v977
      %1160 = vmatpush.bf16.msra.mxu0 %v858
      %1161 = vmatpush.bf16.msra.mxu0 %v850
      %1162 = vmatpush.bf16.msra.mxu0 %v842
      %1163 = vmatpush.bf16.msra.mxu0 %v834
      %1164 = vmatmul.bf16.gmra.mxu0 %v946
      %v1165 = vpop.f32.mrf.mxu0
      %v1166 = vadd.f32 %v887, %v1165
      %v1167 = vpop.f32.mrf.mxu0
      %v1168 = vadd.f32 %v892, %v1167
      %1169 = vmatmul.bf16.gmra.mxu0 %v949
      %v1170 = vpop.f32.mrf.mxu0
      %v1171 = vadd.f32 %v897, %v1170
      %v1172 = vpop.f32.mrf.mxu0
      %v1173 = vadd.f32 %v902, %v1172
      %1174 = vmatmul.bf16.gmra.mxu0 %v952
      %v1175 = vpop.f32.mrf.mxu0
      %v1176 = vadd.f32 %v907, %v1175
      %v1177 = vpop.f32.mrf.mxu0
      %v1178 = vadd.f32 %v912, %v1177
      %1179 = vmatmul.bf16.gmra.mxu0 %v955
      %v1180 = vpop.f32.mrf.mxu0
      %v1181 = vadd.f32 %v917, %v1180
      %v1182 = vpop.f32.mrf.mxu0
      %v1183 = vadd.f32 %v922, %v1182
      %1184 = vdwg.mxu0
      %1185 = vmatpush.bf16.msra.mxu0 0
      %1186 = vmatpush.bf16.msra.mxu0 0
      %1187 = vmatpush.bf16.msra.mxu0 0
      %1188 = vmatpush.bf16.msra.mxu0 %v980
      %1189 = vmatpush.bf16.msra.mxu0 %v859
      %1190 = vmatpush.bf16.msra.mxu0 %v851
      %1191 = vmatpush.bf16.msra.mxu0 %v843
      %1192 = vmatpush.bf16.msra.mxu0 %v835
      %1193 = vmatmul.bf16.gmra.mxu0 %v946
      %v1194 = vpop.f32.mrf.mxu0
      %v1195 = vadd.f32 %v887, %v1194
      %v1196 = vpop.f32.mrf.mxu0
      %v1197 = vadd.f32 %v892, %v1196
      %1198 = vmatmul.bf16.gmra.mxu0 %v949
      %v1199 = vpop.f32.mrf.mxu0
      %v1200 = vadd.f32 %v897, %v1199
      %v1201 = vpop.f32.mrf.mxu0
      %v1202 = vadd.f32 %v902, %v1201
      %1203 = vmatmul.bf16.gmra.mxu0 %v952
      %v1204 = vpop.f32.mrf.mxu0
      %v1205 = vadd.f32 %v907, %v1204
      %v1206 = vpop.f32.mrf.mxu0
      %v1207 = vadd.f32 %v912, %v1206
      %1208 = vmatmul.bf16.gmra.mxu0 %v955
      %v1209 = vpop.f32.mrf.mxu0
      %v1210 = vadd.f32 %v917, %v1209
      %v1211 = vpop.f32.mrf.mxu0
      %v1212 = vadd.f32 %v922, %v1211
      %1213 = vdwg.mxu0
      %v1214 = vmax.f32 %v992, 0.0
      %v1215 = vmax.f32 %v1021, 0.0
      %v1216 = vmax.f32 %v1050, 0.0
      %v1217 = vmax.f32 %v1079, 0.0
      %v1218 = vmax.f32 %v1108, 0.0
      %v1219 = vmax.f32 %v1137, 0.0
      %v1220 = vmax.f32 %v1166, 0.0
      %v1221 = vmax.f32 %v1195, 0.0
      %v1222 = vmax.f32 %v994, 0.0
      %v1223 = vmax.f32 %v1023, 0.0
      %v1224 = vmax.f32 %v1052, 0.0
      %v1225 = vmax.f32 %v1081, 0.0
      %v1226 = vmax.f32 %v1110, 0.0
      %v1227 = vmax.f32 %v1139, 0.0
      %v1228 = vmax.f32 %v1168, 0.0
      %v1229 = vmax.f32 %v1197, 0.0
      %v1230 = vmax.f32 %v997, 0.0
      %v1231 = vmax.f32 %v1026, 0.0
      %v1232 = vmax.f32 %v1055, 0.0
      %v1233 = vmax.f32 %v1084, 0.0
      %v1234 = vmax.f32 %v1113, 0.0
      %v1235 = vmax.f32 %v1142, 0.0
      %v1236 = vmax.f32 %v1171, 0.0
      %v1237 = vmax.f32 %v1200, 0.0
      %v1238 = vmax.f32 %v999, 0.0
      %v1239 = vmax.f32 %v1028, 0.0
      %v1240 = vmax.f32 %v1057, 0.0
      %v1241 = vmax.f32 %v1086, 0.0
      %v1242 = vmax.f32 %v1115, 0.0
      %v1243 = vmax.f32 %v1144, 0.0
      %v1244 = vmax.f32 %v1173, 0.0
      %v1245 = vmax.f32 %v1202, 0.0
      %v1246 = vmax.f32 %v1002, 0.0
      %v1247 = vmax.f32 %v1031, 0.0
      %v1248 = vmax.f32 %v1060, 0.0
      %v1249 = vmax.f32 %v1089, 0.0
      %v1250 = vmax.f32 %v1118, 0.0
      %v1251 = vmax.f32 %v1147, 0.0
      %v1252 = vmax.f32 %v1176, 0.0
      %v1253 = vmax.f32 %v1205, 0.0
      %v1254 = vmax.f32 %v1004, 0.0
      %v1255 = vmax.f32 %v1033, 0.0
      %v1256 = vmax.f32 %v1062, 0.0
      %v1257 = vmax.f32 %v1091, 0.0
      %v1258 = vmax.f32 %v1120, 0.0
      %v1259 = vmax.f32 %v1149, 0.0
      %v1260 = vmax.f32 %v1178, 0.0
      %v1261 = vmax.f32 %v1207, 0.0
      %v1262 = vmax.f32 %v1007, 0.0
      %v1263 = vmax.f32 %v1036, 0.0
      %v1264 = vmax.f32 %v1065, 0.0
      %v1265 = vmax.f32 %v1094, 0.0
      %v1266 = vmax.f32 %v1123, 0.0
      %v1267 = vmax.f32 %v1152, 0.0
      %v1268 = vmax.f32 %v1181, 0.0
      %v1269 = vmax.f32 %v1210, 0.0
      %v1270 = vmax.f32 %v1009, 0.0
      %v1271 = vmax.f32 %v1038, 0.0
      %v1272 = vmax.f32 %v1067, 0.0
      %v1273 = vmax.f32 %v1096, 0.0
      %v1274 = vmax.f32 %v1125, 0.0
      %v1275 = vmax.f32 %v1154, 0.0
      %v1276 = vmax.f32 %v1183, 0.0
      %v1277 = vmax.f32 %v1212, 0.0
      %v1278 = vld [vmem:[%s3] sm:$0xff]
      %vm1279 = vcmask 523264
      %v1281 = vsel %vm1279, %v1278, 0
      %1283 = vmatpush.msra.mxu0 0.0
      %1284 = vmatpush.msra.mxu0 0.0
      %1285 = vmatpush.msra.mxu0 0.0
      %1286 = vmatpush.msra.mxu0 0.0
      %1287 = vmatpush.msra.mxu0 0.0
      %1288 = vmatpush.msra.mxu0 0.0
      %1289 = vmatpush.msra.mxu0 0.0
      %1290 = vmatpush.msra.mxu0 0.0
      %1291 = vmatpush.msra.mxu0 %v1270
      %1292 = vmatpush.msra.mxu0 %v1262
      %1293 = vmatpush.msra.mxu0 %v1254
      %1294 = vmatpush.msra.mxu0 %v1246
      %1295 = vmatpush.msra.mxu0 %v1238
      %1296 = vmatpush.msra.mxu0 %v1230
      %1297 = vmatpush.msra.mxu0 %v1222
      %1298 = vmatpush.msra.mxu0 %v1214
      %1299 = vmatmul.f32.gmra.mxu0 %v1281
      %v1300 = vpop.f32.mrf.mxu0
      %v1301 = vadd.f32 0.0, %v1300
      %1302 = vdwg.mxu0
      %1303 = vmatpush.msra.mxu0 0.0
      %1304 = vmatpush.msra.mxu0 0.0
      %1305 = vmatpush.msra.mxu0 0.0
      %1306 = vmatpush.msra.mxu0 0.0
      %1307 = vmatpush.msra.mxu0 0.0
      %1308 = vmatpush.msra.mxu0 0.0
      %1309 = vmatpush.msra.mxu0 0.0
      %1310 = vmatpush.msra.mxu0 0.0
      %1311 = vmatpush.msra.mxu0 %v1271
      %1312 = vmatpush.msra.mxu0 %v1263
      %1313 = vmatpush.msra.mxu0 %v1255
      %1314 = vmatpush.msra.mxu0 %v1247
      %1315 = vmatpush.msra.mxu0 %v1239
      %1316 = vmatpush.msra.mxu0 %v1231
      %1317 = vmatpush.msra.mxu0 %v1223
      %1318 = vmatpush.msra.mxu0 %v1215
      %1319 = vmatmul.f32.gmra.mxu0 %v1281
      %v1320 = vpop.f32.mrf.mxu0
      %v1321 = vadd.f32 0.0, %v1320
      %1322 = vdwg.mxu0
      %1323 = vmatpush.msra.mxu0 0.0
      %1324 = vmatpush.msra.mxu0 0.0
      %1325 = vmatpush.msra.mxu0 0.0
      %1326 = vmatpush.msra.mxu0 0.0
      %1327 = vmatpush.msra.mxu0 0.0
      %1328 = vmatpush.msra.mxu0 0.0
      %1329 = vmatpush.msra.mxu0 0.0
      %1330 = vmatpush.msra.mxu0 0.0
      %1331 = vmatpush.msra.mxu0 %v1272
      %1332 = vmatpush.msra.mxu0 %v1264
      %1333 = vmatpush.msra.mxu0 %v1256
      %1334 = vmatpush.msra.mxu0 %v1248
      %1335 = vmatpush.msra.mxu0 %v1240
      %1336 = vmatpush.msra.mxu0 %v1232
      %1337 = vmatpush.msra.mxu0 %v1224
      %1338 = vmatpush.msra.mxu0 %v1216
      %1339 = vmatmul.f32.gmra.mxu0 %v1281
      %v1340 = vpop.f32.mrf.mxu0
      %v1341 = vadd.f32 0.0, %v1340
      %1342 = vdwg.mxu0
      %1343 = vmatpush.msra.mxu0 0.0
      %1344 = vmatpush.msra.mxu0 0.0
      %1345 = vmatpush.msra.mxu0 0.0
      %1346 = vmatpush.msra.mxu0 0.0
      %1347 = vmatpush.msra.mxu0 0.0
      %1348 = vmatpush.msra.mxu0 0.0
      %1349 = vmatpush.msra.mxu0 0.0
      %1350 = vmatpush.msra.mxu0 0.0
      %1351 = vmatpush.msra.mxu0 %v1273
      %1352 = vmatpush.msra.mxu0 %v1265
      %1353 = vmatpush.msra.mxu0 %v1257
      %1354 = vmatpush.msra.mxu0 %v1249
      %1355 = vmatpush.msra.mxu0 %v1241
      %1356 = vmatpush.msra.mxu0 %v1233
      %1357 = vmatpush.msra.mxu0 %v1225
      %1358 = vmatpush.msra.mxu0 %v1217
      %1359 = vmatmul.f32.gmra.mxu0 %v1281
      %v1360 = vpop.f32.mrf.mxu0
      %v1361 = vadd.f32 0.0, %v1360
      %1362 = vdwg.mxu0
      %1363 = vmatpush.msra.mxu0 0.0
      %1364 = vmatpush.msra.mxu0 0.0
      %1365 = vmatpush.msra.mxu0 0.0
      %1366 = vmatpush.msra.mxu0 0.0
      %1367 = vmatpush.msra.mxu0 0.0
      %1368 = vmatpush.msra.mxu0 0.0
      %1369 = vmatpush.msra.mxu0 0.0
      %1370 = vmatpush.msra.mxu0 0.0
      %1371 = vmatpush.msra.mxu0 %v1274
      %1372 = vmatpush.msra.mxu0 %v1266
      %1373 = vmatpush.msra.mxu0 %v1258
      %1374 = vmatpush.msra.mxu0 %v1250
      %1375 = vmatpush.msra.mxu0 %v1242
      %1376 = vmatpush.msra.mxu0 %v1234
      %1377 = vmatpush.msra.mxu0 %v1226
      %1378 = vmatpush.msra.mxu0 %v1218
      %1379 = vmatmul.f32.gmra.mxu0 %v1281
      %v1380 = vpop.f32.mrf.mxu0
      %v1381 = vadd.f32 0.0, %v1380
      %1382 = vdwg.mxu0
      %1383 = vmatpush.msra.mxu0 0.0
      %1384 = vmatpush.msra.mxu0 0.0
      %1385 = vmatpush.msra.mxu0 0.0
      %1386 = vmatpush.msra.mxu0 0.0
      %1387 = vmatpush.msra.mxu0 0.0
      %1388 = vmatpush.msra.mxu0 0.0
      %1389 = vmatpush.msra.mxu0 0.0
      %1390 = vmatpush.msra.mxu0 0.0
      %1391 = vmatpush.msra.mxu0 %v1275
      %1392 = vmatpush.msra.mxu0 %v1267
      %1393 = vmatpush.msra.mxu0 %v1259
      %1394 = vmatpush.msra.mxu0 %v1251
      %1395 = vmatpush.msra.mxu0 %v1243
      %1396 = vmatpush.msra.mxu0 %v1235
      %1397 = vmatpush.msra.mxu0 %v1227
      %1398 = vmatpush.msra.mxu0 %v1219
      %1399 = vmatmul.f32.gmra.mxu0 %v1281
      %v1400 = vpop.f32.mrf.mxu0
      %v1401 = vadd.f32 0.0, %v1400
      %1402 = vdwg.mxu0
      %1403 = vmatpush.msra.mxu0 0.0
      %1404 = vmatpush.msra.mxu0 0.0
      %1405 = vmatpush.msra.mxu0 0.0
      %1406 = vmatpush.msra.mxu0 0.0
      %1407 = vmatpush.msra.mxu0 0.0
      %1408 = vmatpush.msra.mxu0 0.0
      %1409 = vmatpush.msra.mxu0 0.0
      %1410 = vmatpush.msra.mxu0 0.0
      %1411 = vmatpush.msra.mxu0 %v1276
      %1412 = vmatpush.msra.mxu0 %v1268
      %1413 = vmatpush.msra.mxu0 %v1260
      %1414 = vmatpush.msra.mxu0 %v1252
      %1415 = vmatpush.msra.mxu0 %v1244
      %1416 = vmatpush.msra.mxu0 %v1236
      %1417 = vmatpush.msra.mxu0 %v1228
      %1418 = vmatpush.msra.mxu0 %v1220
      %1419 = vmatmul.f32.gmra.mxu0 %v1281
      %v1420 = vpop.f32.mrf.mxu0
      %v1421 = vadd.f32 0.0, %v1420
      %1422 = vdwg.mxu0
      %1423 = vmatpush.msra.mxu0 0.0
      %1424 = vmatpush.msra.mxu0 0.0
      %1425 = vmatpush.msra.mxu0 0.0
      %1426 = vmatpush.msra.mxu0 0.0
      %1427 = vmatpush.msra.mxu0 0.0
      %1428 = vmatpush.msra.mxu0 0.0
      %1429 = vmatpush.msra.mxu0 0.0
      %1430 = vmatpush.msra.mxu0 0.0
      %1431 = vmatpush.msra.mxu0 %v1277
      %1432 = vmatpush.msra.mxu0 %v1269
      %1433 = vmatpush.msra.mxu0 %v1261
      %1434 = vmatpush.msra.mxu0 %v1253
      %1435 = vmatpush.msra.mxu0 %v1245
      %1436 = vmatpush.msra.mxu0 %v1237
      %1437 = vmatpush.msra.mxu0 %v1229
      %1438 = vmatpush.msra.mxu0 %v1221
      %1439 = vmatmul.f32.gmra.mxu0 %v1281
      %v1440 = vpop.f32.mrf.mxu0
      %v1441 = vadd.f32 0.0, %v1440
      %1442 = vdwg.mxu0
      %v1443 = vld [vmem:[%s5] sm:$0xff]
      %v1444 = vld [vmem:[%s5 + $0x8] sm:$0xff]
      %v1445 = vld [vmem:[%s5 + $0x10] sm:$0xff]
      %v1446 = vld [vmem:[%s5 + $0x18] sm:$0xff]
      %v1447 = vld [vmem:[%s5 + $0x20] sm:$0xff]
      %v1448 = vld [vmem:[%s5 + $0x28] sm:$0xff]
      %v1449 = vld [vmem:[%s5 + $0x30] sm:$0xff]
      %v1450 = vld [vmem:[%s5 + $0x38] sm:$0xff]
      %v1451 = vld [vmem:[%s5 + $0x40] sm:$0xff]
      %v1452 = vld [vmem:[%s5 + $0x48] sm:$0xff]
      %v1453 = vld [vmem:[%s5 + $0x50] sm:$0xff]
      %v1454 = vld [vmem:[%s5 + $0x58] sm:$0xff]
      %v1455 = vld [vmem:[%s5 + $0x60] sm:$0xff]
      %v1456 = vld [vmem:[%s5 + $0x68] sm:$0xff]
      %v1457 = vld [vmem:[%s5 + $0x70] sm:$0xff]
      %v1458 = vld [vmem:[%s5 + $0x78] sm:$0xff]
      %v1459 = vld [vmem:[%s5 + $0x80] sm:$0xff]
      %v1460 = vld [vmem:[%s5 + $0x88] sm:$0xff]
      %v1461 = vld [vmem:[%s5 + $0x90] sm:$0xff]
      %v1462 = vld [vmem:[%s5 + $0x98] sm:$0xff]
      %v1463 = vld [vmem:[%s5 + $0xa0] sm:$0xff]
      %v1464 = vld [vmem:[%s5 + $0xa8] sm:$0xff]
      %v1465 = vld [vmem:[%s5 + $0xb0] sm:$0xff]
      %v1466 = vld [vmem:[%s5 + $0xb8] sm:$0xff]
      %v1467 = vld [vmem:[%s5 + $0xc0] sm:$0xff]
      %v1468 = vld [vmem:[%s5 + $0xc8] sm:$0xff]
      %v1469 = vld [vmem:[%s5 + $0xd0] sm:$0xff]
      %v1470 = vld [vmem:[%s5 + $0xd8] sm:$0xff]
      %v1471 = vld [vmem:[%s5 + $0xe0] sm:$0xff]
      %v1472 = vld [vmem:[%s5 + $0xe8] sm:$0xff]
      %v1473 = vld [vmem:[%s5 + $0xf0] sm:$0xff]
      %v1474 = vld [vmem:[%s5 + $0xf8] sm:$0xff]
      %v1475 = vld [vmem:[%s5 + $0x100] sm:$0xff]
      %v1476 = vld [vmem:[%s5 + $0x108] sm:$0xff]
      %v1477 = vld [vmem:[%s5 + $0x110] sm:$0xff]
      %v1478 = vld [vmem:[%s5 + $0x118] sm:$0xff]
      %v1479 = vld [vmem:[%s5 + $0x120] sm:$0xff]
      %v1480 = vld [vmem:[%s5 + $0x128] sm:$0xff]
      %v1481 = vld [vmem:[%s5 + $0x130] sm:$0xff]
      %v1482 = vld [vmem:[%s5 + $0x138] sm:$0xff]
      %v1483 = vld [vmem:[%s5 + $0x140] sm:$0xff]
      %v1484 = vld [vmem:[%s5 + $0x148] sm:$0xff]
      %v1485 = vld [vmem:[%s5 + $0x150] sm:$0xff]
      %v1486 = vld [vmem:[%s5 + $0x158] sm:$0xff]
      %v1487 = vld [vmem:[%s5 + $0x160] sm:$0xff]
      %v1488 = vld [vmem:[%s5 + $0x168] sm:$0xff]
      %v1489 = vld [vmem:[%s5 + $0x170] sm:$0xff]
      %v1490 = vld [vmem:[%s5 + $0x178] sm:$0xff]
      %v1491 = vld [vmem:[%s5 + $0x180] sm:$0xff]
      %v1492 = vld [vmem:[%s5 + $0x188] sm:$0xff]
      %v1493 = vld [vmem:[%s5 + $0x190] sm:$0xff]
      %v1494 = vld [vmem:[%s5 + $0x198] sm:$0xff]
      %v1495 = vld [vmem:[%s5 + $0x1a0] sm:$0xff]
      %v1496 = vld [vmem:[%s5 + $0x1a8] sm:$0xff]
      %v1497 = vld [vmem:[%s5 + $0x1b0] sm:$0xff]
      %v1498 = vld [vmem:[%s5 + $0x1b8] sm:$0xff]
      %v1499 = vld [vmem:[%s5 + $0x1c0] sm:$0xff]
      %v1500 = vld [vmem:[%s5 + $0x1c8] sm:$0xff]
      %v1501 = vld [vmem:[%s5 + $0x1d0] sm:$0xff]
      %v1502 = vld [vmem:[%s5 + $0x1d8] sm:$0xff]
      %v1503 = vld [vmem:[%s5 + $0x1e0] sm:$0xff]
      %v1504 = vld [vmem:[%s5 + $0x1e8] sm:$0xff]
      %v1505 = vld [vmem:[%s5 + $0x1f0] sm:$0xff]
      %v1506 = vld [vmem:[%s5 + $0x1f8] sm:$0xff]
      %v1507 = vld [vmem:[%s5 + $0x200] sm:$0xff]
      %v1508 = vld [vmem:[%s5 + $0x208] sm:$0xff]
      %v1509 = vld [vmem:[%s5 + $0x210] sm:$0xff]
      %v1510 = vld [vmem:[%s5 + $0x218] sm:$0xff]
      %v1511 = vld [vmem:[%s5 + $0x220] sm:$0xff]
      %v1512 = vld [vmem:[%s5 + $0x228] sm:$0xff]
      %v1513 = vld [vmem:[%s5 + $0x230] sm:$0xff]
      %v1514 = vld [vmem:[%s5 + $0x238] sm:$0xff]
      %v1515 = vld [vmem:[%s5 + $0x240] sm:$0xff]
      %v1516 = vld [vmem:[%s5 + $0x248] sm:$0xff]
      %v1517 = vld [vmem:[%s5 + $0x250] sm:$0xff]
      %v1518 = vld [vmem:[%s5 + $0x258] sm:$0xff]
      %v1519 = vld [vmem:[%s5 + $0x260] sm:$0xff]
      %v1520 = vld [vmem:[%s5 + $0x268] sm:$0xff]
      %v1521 = vld [vmem:[%s5 + $0x270] sm:$0xff]
      %v1522 = vld [vmem:[%s5 + $0x278] sm:$0xff]
      %v1523 = vld [vmem:[%s5 + $0x280] sm:$0xff]
      %v1524 = vld [vmem:[%s5 + $0x288] sm:$0xff]
      %v1525 = vld [vmem:[%s5 + $0x290] sm:$0xff]
      %v1526 = vld [vmem:[%s5 + $0x298] sm:$0xff]
      %v1527 = vld [vmem:[%s5 + $0x2a0] sm:$0xff]
      %v1528 = vld [vmem:[%s5 + $0x2a8] sm:$0xff]
      %v1529 = vld [vmem:[%s5 + $0x2b0] sm:$0xff]
      %v1530 = vld [vmem:[%s5 + $0x2b8] sm:$0xff]
      %v1531 = vld [vmem:[%s5 + $0x2c0] sm:$0xff]
      %v1532 = vld [vmem:[%s5 + $0x2c8] sm:$0xff]
      %v1533 = vld [vmem:[%s5 + $0x2d0] sm:$0xff]
      %v1534 = vld [vmem:[%s5 + $0x2d8] sm:$0xff]
      %v1535 = vld [vmem:[%s5 + $0x2e0] sm:$0xff]
      %v1536 = vld [vmem:[%s5 + $0x2e8] sm:$0xff]
      %v1537 = vld [vmem:[%s5 + $0x2f0] sm:$0xff]
      %v1538 = vld [vmem:[%s5 + $0x2f8] sm:$0xff]
      %v1539 = vld [vmem:[%s5 + $0x300] sm:$0xff]
      %v1540 = vld [vmem:[%s5 + $0x308] sm:$0xff]
      %v1541 = vld [vmem:[%s5 + $0x310] sm:$0xff]
      %v1542 = vld [vmem:[%s5 + $0x318] sm:$0xff]
      %v1543 = vld [vmem:[%s5 + $0x320] sm:$0xff]
      %v1544 = vld [vmem:[%s5 + $0x328] sm:$0xff]
      %v1545 = vld [vmem:[%s5 + $0x330] sm:$0xff]
      %v1546 = vld [vmem:[%s5 + $0x338] sm:$0xff]
      %v1547 = vld [vmem:[%s5 + $0x340] sm:$0xff]
      %v1548 = vld [vmem:[%s5 + $0x348] sm:$0xff]
      %v1549 = vld [vmem:[%s5 + $0x350] sm:$0xff]
      %v1550 = vld [vmem:[%s5 + $0x358] sm:$0xff]
      %v1551 = vld [vmem:[%s5 + $0x360] sm:$0xff]
      %v1552 = vld [vmem:[%s5 + $0x368] sm:$0xff]
      %v1553 = vld [vmem:[%s5 + $0x370] sm:$0xff]
      %v1554 = vld [vmem:[%s5 + $0x378] sm:$0xff]
      %v1555 = vld [vmem:[%s5 + $0x380] sm:$0xff]
      %v1556 = vld [vmem:[%s5 + $0x388] sm:$0xff]
      %v1557 = vld [vmem:[%s5 + $0x390] sm:$0xff]
      %v1558 = vld [vmem:[%s5 + $0x398] sm:$0xff]
      %v1559 = vld [vmem:[%s5 + $0x3a0] sm:$0xff]
      %v1560 = vld [vmem:[%s5 + $0x3a8] sm:$0xff]
      %v1561 = vld [vmem:[%s5 + $0x3b0] sm:$0xff]
      %v1562 = vld [vmem:[%s5 + $0x3b8] sm:$0xff]
      %v1563 = vld [vmem:[%s5 + $0x3c0] sm:$0xff]
      %v1564 = vld [vmem:[%s5 + $0x3c8] sm:$0xff]
      %v1565 = vld [vmem:[%s5 + $0x3d0] sm:$0xff]
      %v1566 = vld [vmem:[%s5 + $0x3d8] sm:$0xff]
      %v1567 = vld [vmem:[%s5 + $0x3e0] sm:$0xff]
      %v1568 = vld [vmem:[%s5 + $0x3e8] sm:$0xff]
      %v1569 = vld [vmem:[%s5 + $0x3f0] sm:$0xff]
      %v1570 = vld [vmem:[%s5 + $0x3f8] sm:$0xff]
      %v1571 = vld [vmem:[%s4] sm:$0xff]
      %1573 = vset.pattern.permute.xlu0 0
      %1574 = vperm.xlu0 %1573, %v1571
      %v1575 = vpop.permute.xlu0 %1574
      %1577 = vmatpush.msra.mxu0 %v1458
      %1578 = vmatpush.msra.mxu0 %v1457
      %1579 = vmatpush.msra.mxu0 %v1456
      %1580 = vmatpush.msra.mxu0 %v1455
      %1581 = vmatpush.msra.mxu0 %v1454
      %1582 = vmatpush.msra.mxu0 %v1453
      %1583 = vmatpush.msra.mxu0 %v1452
      %1584 = vmatpush.msra.mxu0 %v1451
      %1585 = vmatpush.msra.mxu0 %v1450
      %1586 = vmatpush.msra.mxu0 %v1449
      %1587 = vmatpush.msra.mxu0 %v1448
      %1588 = vmatpush.msra.mxu0 %v1447
      %1589 = vmatpush.msra.mxu0 %v1446
      %1590 = vmatpush.msra.mxu0 %v1445
      %1591 = vmatpush.msra.mxu0 %v1444
      %1592 = vmatpush.msra.mxu0 %v1443
      %1593 = vmatmul.f32.gmra.mxu0 %v1301
      %v1594 = vpop.f32.mrf.mxu0
      %v1595 = vadd.f32 %v1575, %v1594
      %1596 = vdwg.mxu0
      %1597 = vmatpush.msra.mxu0 %v1474
      %1598 = vmatpush.msra.mxu0 %v1473
      %1599 = vmatpush.msra.mxu0 %v1472
      %1600 = vmatpush.msra.mxu0 %v1471
      %1601 = vmatpush.msra.mxu0 %v1470
      %1602 = vmatpush.msra.mxu0 %v1469
      %1603 = vmatpush.msra.mxu0 %v1468
      %1604 = vmatpush.msra.mxu0 %v1467
      %1605 = vmatpush.msra.mxu0 %v1466
      %1606 = vmatpush.msra.mxu0 %v1465
      %1607 = vmatpush.msra.mxu0 %v1464
      %1608 = vmatpush.msra.mxu0 %v1463
      %1609 = vmatpush.msra.mxu0 %v1462
      %1610 = vmatpush.msra.mxu0 %v1461
      %1611 = vmatpush.msra.mxu0 %v1460
      %1612 = vmatpush.msra.mxu0 %v1459
      %1613 = vmatmul.f32.gmra.mxu0 %v1321
      %v1614 = vpop.f32.mrf.mxu0
      %v1615 = vadd.f32 %v1595, %v1614
      %1616 = vdwg.mxu0
      %1617 = vmatpush.msra.mxu0 %v1490
      %1618 = vmatpush.msra.mxu0 %v1489
      %1619 = vmatpush.msra.mxu0 %v1488
      %1620 = vmatpush.msra.mxu0 %v1487
      %1621 = vmatpush.msra.mxu0 %v1486
      %1622 = vmatpush.msra.mxu0 %v1485
      %1623 = vmatpush.msra.mxu0 %v1484
      %1624 = vmatpush.msra.mxu0 %v1483
      %1625 = vmatpush.msra.mxu0 %v1482
      %1626 = vmatpush.msra.mxu0 %v1481
      %1627 = vmatpush.msra.mxu0 %v1480
      %1628 = vmatpush.msra.mxu0 %v1479
      %1629 = vmatpush.msra.mxu0 %v1478
      %1630 = vmatpush.msra.mxu0 %v1477
      %1631 = vmatpush.msra.mxu0 %v1476
      %1632 = vmatpush.msra.mxu0 %v1475
      %1633 = vmatmul.f32.gmra.mxu0 %v1341
      %v1634 = vpop.f32.mrf.mxu0
      %v1635 = vadd.f32 %v1615, %v1634
      %1636 = vdwg.mxu0
      %1637 = vmatpush.msra.mxu0 %v1506
      %1638 = vmatpush.msra.mxu0 %v1505
      %1639 = vmatpush.msra.mxu0 %v1504
      %1640 = vmatpush.msra.mxu0 %v1503
      %1641 = vmatpush.msra.mxu0 %v1502
      %1642 = vmatpush.msra.mxu0 %v1501
      %1643 = vmatpush.msra.mxu0 %v1500
      %1644 = vmatpush.msra.mxu0 %v1499
      %1645 = vmatpush.msra.mxu0 %v1498
      %1646 = vmatpush.msra.mxu0 %v1497
      %1647 = vmatpush.msra.mxu0 %v1496
      %1648 = vmatpush.msra.mxu0 %v1495
      %1649 = vmatpush.msra.mxu0 %v1494
      %1650 = vmatpush.msra.mxu0 %v1493
      %1651 = vmatpush.msra.mxu0 %v1492
      %1652 = vmatpush.msra.mxu0 %v1491
      %1653 = vmatmul.f32.gmra.mxu0 %v1361
      %v1654 = vpop.f32.mrf.mxu0
      %v1655 = vadd.f32 %v1635, %v1654
      %1656 = vdwg.mxu0
      %1657 = vmatpush.msra.mxu0 %v1522
      %1658 = vmatpush.msra.mxu0 %v1521
      %1659 = vmatpush.msra.mxu0 %v1520
      %1660 = vmatpush.msra.mxu0 %v1519
      %1661 = vmatpush.msra.mxu0 %v1518
      %1662 = vmatpush.msra.mxu0 %v1517
      %1663 = vmatpush.msra.mxu0 %v1516
      %1664 = vmatpush.msra.mxu0 %v1515
      %1665 = vmatpush.msra.mxu0 %v1514
      %1666 = vmatpush.msra.mxu0 %v1513
      %1667 = vmatpush.msra.mxu0 %v1512
      %1668 = vmatpush.msra.mxu0 %v1511
      %1669 = vmatpush.msra.mxu0 %v1510
      %1670 = vmatpush.msra.mxu0 %v1509
      %1671 = vmatpush.msra.mxu0 %v1508
      %1672 = vmatpush.msra.mxu0 %v1507
      %1673 = vmatmul.f32.gmra.mxu0 %v1381
      %v1674 = vpop.f32.mrf.mxu0
      %v1675 = vadd.f32 %v1655, %v1674
      %1676 = vdwg.mxu0
      %1677 = vmatpush.msra.mxu0 %v1538
      %1678 = vmatpush.msra.mxu0 %v1537
      %1679 = vmatpush.msra.mxu0 %v1536
      %1680 = vmatpush.msra.mxu0 %v1535
      %1681 = vmatpush.msra.mxu0 %v1534
      %1682 = vmatpush.msra.mxu0 %v1533
      %1683 = vmatpush.msra.mxu0 %v1532
      %1684 = vmatpush.msra.mxu0 %v1531
      %1685 = vmatpush.msra.mxu0 %v1530
      %1686 = vmatpush.msra.mxu0 %v1529
      %1687 = vmatpush.msra.mxu0 %v1528
      %1688 = vmatpush.msra.mxu0 %v1527
      %1689 = vmatpush.msra.mxu0 %v1526
      %1690 = vmatpush.msra.mxu0 %v1525
      %1691 = vmatpush.msra.mxu0 %v1524
      %1692 = vmatpush.msra.mxu0 %v1523
      %1693 = vmatmul.f32.gmra.mxu0 %v1401
      %v1694 = vpop.f32.mrf.mxu0
      %v1695 = vadd.f32 %v1675, %v1694
      %1696 = vdwg.mxu0
      %1697 = vmatpush.msra.mxu0 %v1554
      %1698 = vmatpush.msra.mxu0 %v1553
      %1699 = vmatpush.msra.mxu0 %v1552
      %1700 = vmatpush.msra.mxu0 %v1551
      %1701 = vmatpush.msra.mxu0 %v1550
      %1702 = vmatpush.msra.mxu0 %v1549
      %1703 = vmatpush.msra.mxu0 %v1548
      %1704 = vmatpush.msra.mxu0 %v1547
      %1705 = vmatpush.msra.mxu0 %v1546
      %1706 = vmatpush.msra.mxu0 %v1545
      %1707 = vmatpush.msra.mxu0 %v1544
      %1708 = vmatpush.msra.mxu0 %v1543
      %1709 = vmatpush.msra.mxu0 %v1542
      %1710 = vmatpush.msra.mxu0 %v1541
      %1711 = vmatpush.msra.mxu0 %v1540
      %1712 = vmatpush.msra.mxu0 %v1539
      %1713 = vmatmul.f32.gmra.mxu0 %v1421
      %v1714 = vpop.f32.mrf.mxu0
      %v1715 = vadd.f32 %v1695, %v1714
      %1716 = vdwg.mxu0
      %1717 = vmatpush.msra.mxu0 %v1570
      %1718 = vmatpush.msra.mxu0 %v1569
      %1719 = vmatpush.msra.mxu0 %v1568
      %1720 = vmatpush.msra.mxu0 %v1567
      %1721 = vmatpush.msra.mxu0 %v1566
      %1722 = vmatpush.msra.mxu0 %v1565
      %1723 = vmatpush.msra.mxu0 %v1564
      %1724 = vmatpush.msra.mxu0 %v1563
      %1725 = vmatpush.msra.mxu0 %v1562
      %1726 = vmatpush.msra.mxu0 %v1561
      %1727 = vmatpush.msra.mxu0 %v1560
      %1728 = vmatpush.msra.mxu0 %v1559
      %1729 = vmatpush.msra.mxu0 %v1558
      %1730 = vmatpush.msra.mxu0 %v1557
      %1731 = vmatpush.msra.mxu0 %v1556
      %1732 = vmatpush.msra.mxu0 %v1555
      %1733 = vmatmul.f32.gmra.mxu0 %v1441
      %v1734 = vpop.f32.mrf.mxu0
      %v1735 = vadd.f32 %v1715, %v1734
      %1736 = vdwg.mxu0
      %1737 = vst [vmem:[%s249] sm:$0xff] %v1735
      %p1738 = scmp.lt.s32.totalorder %s17, 1
      %s1739 = scalar_select %p1738, %s17, 1
      %s1740 = smul.addr %s1739, 8
      %s1741 = scalar_lea.vmem %s6, %s1740
      // Predicated region
      $region45: #{model_2p5d_forward.1} parent=43 // pred_check
        %p1742 = pneg %p166
      $region46: #{model_2p5d_forward.1} parent=43 // pred_check_branch
        %1744 = sbr.rel (%p1742) target = $region48
      $region47: #{model_2p5d_forward.1} parent=43 // pred_region
        _
      $region48: #{model_2p5d_forward.1} parent=43 // pred_fallthru
        _
    $region44: #{model_2p5d_forward.1} parent=5 // pred_fallthru
      _
    %p1745 = scmp.le.s32.totalorder 2, %s12
    // Predicated region
    $region49: #{model_2p5d_forward.1} parent=5 // pred_check
      %p1746 = pneg %p1745
    $region50: #{model_2p5d_forward.1} parent=5 // pred_check_branch
      %1748 = sbr.rel (%p1746) target = $region52
    $region51: #{model_2p5d_forward.1} parent=5 // pred_region
      %s1749 = ssub.s32 %s12, 2
      // Predicated region
      $region53: #{model_2p5d_forward.1} parent=51 // pred_check
        %p1750 = pneg %p172
      $region54: #{model_2p5d_forward.1} parent=51 // pred_check_branch
        %1752 = sbr.rel (%p1750) target = $region56
      $region55: #{model_2p5d_forward.1} parent=51 // pred_region
        %p1753 = scmp.lt.s32.totalorder %s18, 1
        %s1754 = scalar_select %p1753, %s18, 1
        %s1755 = smul.addr %s1754, 8
        %s1756 = scalar_lea.vmem %s6, %s1755
      $region56: #{model_2p5d_forward.1} parent=51 // pred_fallthru
        _
    $region52: #{model_2p5d_forward.1} parent=5 // pred_fallthru
      _
  $region6: #{model_2p5d_forward.1} parent=0 // loop_footer
    %s16 = sadd.s32 1, %s12
  $region7: #{model_2p5d_forward.1} parent=0 // loop_footer_branch
    %11 = sbr.rel target = $region3
  $region8: #{model_2p5d_forward.1} parent=0 // loop_exit
    _

</llo_original>
